<compile_context>
chip_gen: v7x
topology: tpu7x:2x2x1
jax: 0.10.0
libtpu: 0.0.40
codegen_flags: <defaults>
</compile_context>

<pallas_src>
import jax
import jax.numpy as jnp
import numpy as np
from jax import lax
from jax.experimental import pallas as pl
from jax.experimental.pallas import tpu as pltpu


def _regroup_gates(a, H, axis=-1):
    """Reorder torch LSTM gate blocks (i, f, g, o) -> (i, f, o, g) along axis.

    Free host-side (trace-time) work; lets the kernel apply one sigmoid to the
    contiguous (i, f, o) slab and one tanh to the trailing g slab.
    """
    i_f = lax.slice_in_dim(a, 0, 2 * H, axis=axis)
    g = lax.slice_in_dim(a, 2 * H, 3 * H, axis=axis)
    o = lax.slice_in_dim(a, 3 * H, 4 * H, axis=axis)
    return jnp.concatenate([i_f, o, g], axis=axis)


def _make_lstm_kernel(*, t_blk, H, emit_seq, unroll):
    """Build the per-(batch-block, time-block) LSTM recurrence kernel."""

    def kernel(x_ref, wih_ref, whh_ref, bias_ref, *rest):
        # x_ref    : (t_blk, B, F)  input slab (f32 first layer, bf16 after)
        # wih_ref  : (F, 4H) bf16   input->gates weight (transposed, regrouped)
        # whh_ref  : (H, 4H) bf16   hidden->gates weight (transposed, regrouped)
        # bias_ref : (1, 4H) f32    b_ih + b_hh (regrouped)
        if emit_seq:
            out_ref, h_out_ref, c_out_ref, h_sc, c_sc, xg_sc = rest
        else:
            out_ref = None
            h_out_ref, c_out_ref, h_sc, c_sc, xg_sc = rest

        t_idx = pl.program_id(1)          # time-block index (sequential axis)
        B = h_sc.shape[0]

        @pl.when(t_idx == 0)
        def _():
            h_sc[...] = jnp.zeros_like(h_sc)
            c_sc[...] = jnp.zeros_like(c_sc)

        wih = wih_ref[...]                # (F, 4H) bf16
        whh = whh_ref[...]                # (H, 4H) bf16, loaded once per block
        bias = bias_ref[...]              # (1, 4H) f32

        # Fused input projection for the whole time block, staged in VMEM:
        # the f32 gate slab never touches HBM.  Bias folded here (no per-step
        # broadcast).  These MXU pushes are off the recurrence critical path.
        for t in range(t_blk):
            xg_sc[pl.ds(t * B, B), :] = (
                jnp.dot(x_ref[t].astype(jnp.bfloat16), wih,
                        preferred_element_type=jnp.float32) + bias)

        def step(i, carry):
            h, c = carry                  # f32 (B, H) state held in vregs
            off = pl.multiple_of(i * B, B)
            # Only the recurrent contribution sits on the per-step serial
            # chain.  TODO(synk): hold whh in the MXU weight registers across
            # the block (pltpu.matmul_push_rhs/acc_lhs/pop) to skip per-step
            # RHS staging; on v7x fold the xg add into the MRB accumulate.
            g = xg_sc[pl.ds(off, B), :] + jnp.dot(
                h.astype(jnp.bfloat16), whh,
                preferred_element_type=jnp.float32)          # (B, 4H) f32
            # Gates are host-permuted to [i, f, o | g]: one sigmoid slab +
            # tanh(g) + tanh(c) = 3 EUP pushes per step (was 5).
            sig = jax.nn.sigmoid(g[:, :3 * H])
            g_g = jnp.tanh(g[:, 3 * H:])
            i_g = sig[:, :H]
            f_g = sig[:, H:2 * H]
            o_g = sig[:, 2 * H:]
            c = f_g * c + i_g * g_g
            h = o_g * jnp.tanh(c)
            if emit_seq:
                out_ref[i] = h.astype(out_ref.dtype)
            return h, c

        h, c = lax.fori_loop(0, t_blk, step, (h_sc[...], c_sc[...]),
                             unroll=unroll)
        h_sc[...] = h
        c_sc[...] = c

        @pl.when(t_idx == pl.num_programs(1) - 1)
        def _():
            h_out_ref[...] = h.astype(h_out_ref.dtype)
            c_out_ref[...] = c.astype(c_out_ref.dtype)

    return kernel


def _pick_time_block(T, max_blk=64):
    """Largest divisor of T not exceeding max_blk (T itself if small)."""
    if T <= max_blk:
        return T
    for cand in range(max_blk, 0, -1):
        if T % cand == 0:
            return cand
    return 1


def lstm_layer_pallas(x, w_ih, w_hh, b_ih, b_hh, *, emit_seq=True,
                      t_blk=None, b_blk=None):
    """Run one LSTM layer over the whole sequence.

    x: (T, B, F) f32 or bf16; w_ih: (4H, F); w_hh: (4H, H); b_ih, b_hh: (4H,)
    Returns (out_seq (T,B,H) bf16 or None, h_last (B,H) f32, c_last (B,H) f32).
    """
    T, B, F = x.shape
    H = w_hh.shape[1]

    # Host-side prep: bf16 MXU weights, combined bias, gate regroup.
    wih_t = _regroup_gates(jnp.asarray(w_ih, jnp.bfloat16).T, H)     # (F, 4H)
    whh_t = _regroup_gates(jnp.asarray(w_hh, jnp.bfloat16).T, H)     # (H, 4H)
    bias = _regroup_gates((b_ih + b_hh).astype(jnp.float32), H)
    bias = bias.reshape(1, 4 * H)

    if t_blk is None:
        # Larger time blocks amortize the ~0.35 us per-grid-step overhead.
        # For v7x (64 MiB VMEM) at production H/B, shrink max_blk and/or
        # b_blk so block + double buffers stay under ~1/3 of VMEM.
        t_blk = _pick_time_block(T, max_blk=64)
    assert T % t_blk == 0
    if b_blk is None:
        b_blk = B   # single batch block at demo size; >= 2 aligned batch
                    # blocks engage v7x's second TensorCore via "parallel".
    assert B % b_blk == 0 and (b_blk == B or b_blk % 8 == 0)
    grid = (B // b_blk, T // t_blk)

    # Full unroll while the recurrent state fits comfortably in the vreg file;
    # partial unroll at production H to avoid spills.
    state_vregs = -(-b_blk // 8) * -(-H // 128)
    unroll = True if t_blk * state_vregs <= 32 else 8

    kernel = _make_lstm_kernel(t_blk=t_blk, H=H, emit_seq=emit_seq,
                               unroll=unroll)

    out_shape = []
    out_specs = []
    if emit_seq:
        # bf16 sequence output: the next layer immediately consumes bf16 for
        # its MXU projection; halves sequence writeback DMA.
        out_shape.append(jax.ShapeDtypeStruct((T, B, H), jnp.bfloat16))
        out_specs.append(pl.BlockSpec((t_blk, b_blk, H),
                                      lambda b, t: (t, b, 0)))
    out_shape += [jax.ShapeDtypeStruct((B, H), jnp.float32),
                  jax.ShapeDtypeStruct((B, H), jnp.float32)]
    out_specs += [pl.BlockSpec((b_blk, H), lambda b, t: (b, 0)),
                  pl.BlockSpec((b_blk, H), lambda b, t: (b, 0))]

    results = pl.pallas_call(
        kernel,
        out_shape=tuple(out_shape),
        grid_spec=pltpu.PrefetchScalarGridSpec(
            num_scalar_prefetch=0,
            grid=grid,
            in_specs=[
                pl.BlockSpec((t_blk, b_blk, F), lambda b, t: (t, b, 0)),
                # Constant-index weight/bias blocks: Pallas skips the re-DMA
                # when the block index repeats.  TODO(synk): at production H
                # use pipeline_mode=pl.Buffered(1) here to drop the unused
                # second buffer inside v7x's 64 MiB VMEM budget.
                pl.BlockSpec((F, 4 * H), lambda b, t: (0, 0)),
                pl.BlockSpec((H, 4 * H), lambda b, t: (0, 0)),
                pl.BlockSpec((1, 4 * H), lambda b, t: (0, 0)),
            ],
            out_specs=tuple(out_specs),
            scratch_shapes=[
                pltpu.VMEM((b_blk, H), jnp.float32),               # h state
                pltpu.VMEM((b_blk, H), jnp.float32),               # c state
                pltpu.VMEM((t_blk * b_blk, 4 * H), jnp.float32),   # gate slab
            ],
        ),
        compiler_params=pltpu.CompilerParams(
            dimension_semantics=("parallel", "arbitrary"),
            vmem_limit_bytes=32 * 1024 * 1024),
    )(x, wih_t, whh_t, bias)

    if emit_seq:
        out_seq, h_last, c_last = results
    else:
        out_seq = None
        h_last, c_last = results
    return out_seq, h_last, c_last


def encoder_forward(x, params):
    """Equivalent of Encoder.forward: returns (hidden, cell).

    x: (T, B, input_size); params: list of (w_ih, w_hh, b_ih, b_hh) per layer.
    hidden, cell: (num_layers, B, hidden_size) f32
    """
    h_finals, c_finals = [], []
    layer_in = x
    n_layers = len(params)
    for li, (w_ih, w_hh, b_ih, b_hh) in enumerate(params):
        # Last layer's sequence output is discarded by the Encoder, so skip
        # allocating/writing it entirely (pallas_call is opaque to XLA DCE).
        emit_seq = li < n_layers - 1
        out_seq, h_last, c_last = lstm_layer_pallas(
            layer_in, w_ih, w_hh, b_ih, b_hh, emit_seq=emit_seq)
        # (inter-layer dropout skipped: eval-mode semantics)
        layer_in = out_seq
        h_finals.append(h_last)
        c_finals.append(c_last)
    return jnp.stack(h_finals, axis=0), jnp.stack(c_finals, axis=0)


def encoder_forward_ref(x, params):
    """Pure-JAX f32 reference (same math as torch.nn.LSTM, eval mode)."""
    h_finals, c_finals = [], []
    layer_in = x
    for (w_ih, w_hh, b_ih, b_hh) in params:
        T, B, _ = layer_in.shape
        H = w_hh.shape[1]
        h = jnp.zeros((B, H), jnp.float32)
        c = jnp.zeros((B, H), jnp.float32)
        outs = []
        for t in range(T):
            gates = layer_in[t] @ w_ih.T + h @ w_hh.T + b_ih + b_hh
            i_g = jax.nn.sigmoid(gates[:, 0 * H:1 * H])
            f_g = jax.nn.sigmoid(gates[:, 1 * H:2 * H])
            g_g = jnp.tanh(gates[:, 2 * H:3 * H])
            o_g = jax.nn.sigmoid(gates[:, 3 * H:4 * H])
            c = f_g * c + i_g * g_g
            h = o_g * jnp.tanh(c)
            outs.append(h)
        layer_in = jnp.stack(outs, axis=0)
        h_finals.append(h)
        c_finals.append(c)
    return jnp.stack(h_finals, axis=0), jnp.stack(c_finals, axis=0)


def init_lstm_params(key, input_size, hidden_size, num_layers):
    """Deterministic init mirroring torch.nn.LSTM parameter shapes."""
    params = []
    k = 1.0 / np.sqrt(hidden_size)
    for layer in range(num_layers):
        in_f = input_size if layer == 0 else hidden_size
        key, k1, k2, k3, k4 = jax.random.split(key, 5)
        w_ih = jax.random.uniform(k1, (4 * hidden_size, in_f), jnp.float32, -k, k)
        w_hh = jax.random.uniform(k2, (4 * hidden_size, hidden_size), jnp.float32, -k, k)
        b_ih = jax.random.uniform(k3, (4 * hidden_size,), jnp.float32, -k, k)
        b_hh = jax.random.uniform(k4, (4 * hidden_size,), jnp.float32, -k, k)
        params.append((w_ih, w_hh, b_ih, b_hh))
    return params


if __name__ == "__main__":
    # Small shapes consistent with nn.LSTM(input_size, hidden_size, num_layers):
    seq_len, batch, input_size, hidden_size, num_layers = 8, 8, 16, 32, 2
    dropout_p = 0.1  # unused in eval-mode forward

    key = jax.random.PRNGKey(0)
    key, kx = jax.random.split(key)
    x = jax.random.normal(kx, (seq_len, batch, input_size), jnp.float32)
    params = init_lstm_params(key, input_size, hidden_size, num_layers)

    hidden, cell = encoder_forward(x, params)
    hidden = jax.block_until_ready(hidden)
    cell = jax.block_until_ready(cell)

    # Sanity-check against a pure-f32 JAX reference of the same LSTM math.
    # MXU operands and inter-layer activations are bf16 (f32 accumulation and
    # f32 recurrent state), so use a bf16-appropriate tolerance.
    hidden_ref, cell_ref = encoder_forward_ref(x, params)
    np.testing.assert_allclose(np.asarray(hidden), np.asarray(hidden_ref),
                               rtol=4e-2, atol=4e-2)
    np.testing.assert_allclose(np.asarray(cell), np.asarray(cell_ref),
                               rtol=4e-2, atol=4e-2)

    assert hidden.shape == (num_layers, batch, hidden_size)
    assert cell.shape == (num_layers, batch, hidden_size)
    print("KERNEL_OK")
</pallas_src>

<mosaic_0001>
module attributes {stable_mosaic.version = 11 : i64} {
  func.func @kernel(%arg0: i32, %arg1: i32, %arg2: memref<8x8x16xf32, #tpu.memory_space<vmem>>, %arg3: memref<16x128xbf16, #tpu.memory_space<vmem>>, %arg4: memref<32x128xbf16, #tpu.memory_space<vmem>>, %arg5: memref<1x128xf32, #tpu.memory_space<vmem>>, %arg6: memref<8x8x32xbf16, #tpu.memory_space<vmem>>, %arg7: memref<8x32xf32, #tpu.memory_space<vmem>>, %arg8: memref<8x32xf32, #tpu.memory_space<vmem>>, %arg9: memref<8x32xf32, #tpu.memory_space<vmem>>, %arg10: memref<8x32xf32, #tpu.memory_space<vmem>>, %arg11: memref<64x128xf32, #tpu.memory_space<vmem>>) attributes {dimension_semantics = [#tpu.dimension_semantics<parallel>, #tpu.dimension_semantics<arbitrary>], iteration_bounds = array<i64: 1, 1>, scalar_prefetch = 0 : i64, scratch_operands = 3 : i64, tpu.core_type = #tpu.core_type<tc>, window_params = [{transform_indices = @transform_0, window_bounds = array<i64: 8, 8, 16>}, {pipeline_mode = #tpu.pipeline_mode<synchronous>, transform_indices = @transform_1, window_bounds = array<i64: 16, 128>}, {pipeline_mode = #tpu.pipeline_mode<synchronous>, transform_indices = @transform_2, window_bounds = array<i64: 32, 128>}, {pipeline_mode = #tpu.pipeline_mode<synchronous>, transform_indices = @transform_3, window_bounds = array<i64: 1, 128>}, {transform_indices = @transform_4, window_bounds = array<i64: 8, 8, 32>}, {transform_indices = @transform_5, window_bounds = array<i64: 8, 32>}, {transform_indices = @transform_6, window_bounds = array<i64: 8, 32>}]} {
    %c0_i32 = arith.constant 0 : i32
    %0 = arith.cmpi eq, %arg1, %c0_i32 : i32
    %1 = arith.extui %0 : i1 to i32
    %c0_i32_0 = arith.constant 0 : i32
    %2 = arith.cmpi ne, %1, %c0_i32_0 : i32
    scf.if %2 {
      %cst_98 = arith.constant 0.000000e+00 : f32
      %293 = vector.broadcast %cst_98 : f32 to vector<8x32xf32>
      %c0_99 = arith.constant 0 : index
      %c0_100 = arith.constant 0 : index
      %294 = vector.load %arg9[%c0_99, %c0_100] : memref<8x32xf32, #tpu.memory_space<vmem>>, vector<8x32xf32>
      tpu.vector_store %arg9[%c0_99, %c0_100], %293 {strides = array<i32>} : memref<8x32xf32, #tpu.memory_space<vmem>>, vector<8x32xf32>,
      %cst_101 = arith.constant 0.000000e+00 : f32
      %295 = vector.broadcast %cst_101 : f32 to vector<8x32xf32>
      %c0_102 = arith.constant 0 : index
      %c0_103 = arith.constant 0 : index
      %296 = vector.load %arg10[%c0_102, %c0_103] : memref<8x32xf32, #tpu.memory_space<vmem>>, vector<8x32xf32>
      tpu.vector_store %arg10[%c0_102, %c0_103], %295 {strides = array<i32>} : memref<8x32xf32, #tpu.memory_space<vmem>>, vector<8x32xf32>,
    } else {
    }
    %c0 = arith.constant 0 : index
    %c0_1 = arith.constant 0 : index
    %3 = vector.load %arg3[%c0, %c0_1] : memref<16x128xbf16, #tpu.memory_space<vmem>>, vector<16x128xbf16>
    %c0_2 = arith.constant 0 : index
    %c0_3 = arith.constant 0 : index
    %4 = vector.load %arg4[%c0_2, %c0_3] : memref<32x128xbf16, #tpu.memory_space<vmem>>, vector<32x128xbf16>
    %c0_4 = arith.constant 0 : index
    %c0_5 = arith.constant 0 : index
    %5 = vector.load %arg5[%c0_4, %c0_5] : memref<1x128xf32, #tpu.memory_space<vmem>>, vector<1x128xf32>
    %c0_6 = arith.constant 0 : index
    %c0_7 = arith.constant 0 : index
    %c0_8 = arith.constant 0 : index
    %6 = vector.load %arg2[%c0_6, %c0_7, %c0_8] : memref<8x8x16xf32, #tpu.memory_space<vmem>>, vector<1x8x16xf32>
    %7 = vector.shape_cast %6 : vector<1x8x16xf32> to vector<8x16xf32>
    %8 = arith.truncf %7 : vector<8x16xf32> to vector<8x16xbf16>
    %cst = arith.constant dense<0.000000e+00> : vector<8x128xf32>
    %9 = tpu.matmul %8, %3, %cst {dimension_numbers = #tpu.dot_dimension_numbers<[1], [0], [0], [1], [0, 0, 1, 1], [], []>} : vector<8x16xbf16>, vector<16x128xbf16>, vector<8x128xf32> -> vector<8x128xf32>
    %10 = vector.broadcast %5 : vector<1x128xf32> to vector<8x128xf32>
    %11 = arith.addf %9, %10 : vector<8x128xf32>
    %c0_9 = arith.constant 0 : index
    %c0_10 = arith.constant 0 : index
    %12 = vector.load %arg11[%c0_9, %c0_10] : memref<64x128xf32, #tpu.memory_space<vmem>>, vector<8x128xf32>
    tpu.vector_store %arg11[%c0_9, %c0_10], %11 {strides = array<i32>} : memref<64x128xf32, #tpu.memory_space<vmem>>, vector<8x128xf32>,
    %c1 = arith.constant 1 : index
    %c0_11 = arith.constant 0 : index
    %c0_12 = arith.constant 0 : index
    %13 = vector.load %arg2[%c1, %c0_11, %c0_12] : memref<8x8x16xf32, #tpu.memory_space<vmem>>, vector<1x8x16xf32>
    %14 = vector.shape_cast %13 : vector<1x8x16xf32> to vector<8x16xf32>
    %15 = arith.truncf %14 : vector<8x16xf32> to vector<8x16xbf16>
    %cst_13 = arith.constant dense<0.000000e+00> : vector<8x128xf32>
    %16 = tpu.matmul %15, %3, %cst_13 {dimension_numbers = #tpu.dot_dimension_numbers<[1], [0], [0], [1], [0, 0, 1, 1], [], []>} : vector<8x16xbf16>, vector<16x128xbf16>, vector<8x128xf32> -> vector<8x128xf32>
    %17 = vector.broadcast %5 : vector<1x128xf32> to vector<8x128xf32>
    %18 = arith.addf %16, %17 : vector<8x128xf32>
    %c8 = arith.constant 8 : index
    %c0_14 = arith.constant 0 : index
    %19 = vector.load %arg11[%c8, %c0_14] : memref<64x128xf32, #tpu.memory_space<vmem>>, vector<8x128xf32>
    tpu.vector_store %arg11[%c8, %c0_14], %18 {strides = array<i32>} : memref<64x128xf32, #tpu.memory_space<vmem>>, vector<8x128xf32>,
    %c2 = arith.constant 2 : index
    %c0_15 = arith.constant 0 : index
    %c0_16 = arith.constant 0 : index
    %20 = vector.load %arg2[%c2, %c0_15, %c0_16] : memref<8x8x16xf32, #tpu.memory_space<vmem>>, vector<1x8x16xf32>
    %21 = vector.shape_cast %20 : vector<1x8x16xf32> to vector<8x16xf32>
    %22 = arith.truncf %21 : vector<8x16xf32> to vector<8x16xbf16>
    %cst_17 = arith.constant dense<0.000000e+00> : vector<8x128xf32>
    %23 = tpu.matmul %22, %3, %cst_17 {dimension_numbers = #tpu.dot_dimension_numbers<[1], [0], [0], [1], [0, 0, 1, 1], [], []>} : vector<8x16xbf16>, vector<16x128xbf16>, vector<8x128xf32> -> vector<8x128xf32>
    %24 = vector.broadcast %5 : vector<1x128xf32> to vector<8x128xf32>
    %25 = arith.addf %23, %24 : vector<8x128xf32>
    %c16 = arith.constant 16 : index
    %c0_18 = arith.constant 0 : index
    %26 = vector.load %arg11[%c16, %c0_18] : memref<64x128xf32, #tpu.memory_space<vmem>>, vector<8x128xf32>
    tpu.vector_store %arg11[%c16, %c0_18], %25 {strides = array<i32>} : memref<64x128xf32, #tpu.memory_space<vmem>>, vector<8x128xf32>,
    %c3 = arith.constant 3 : index
    %c0_19 = arith.constant 0 : index
    %c0_20 = arith.constant 0 : index
    %27 = vector.load %arg2[%c3, %c0_19, %c0_20] : memref<8x8x16xf32, #tpu.memory_space<vmem>>, vector<1x8x16xf32>
    %28 = vector.shape_cast %27 : vector<1x8x16xf32> to vector<8x16xf32>
    %29 = arith.truncf %28 : vector<8x16xf32> to vector<8x16xbf16>
    %cst_21 = arith.constant dense<0.000000e+00> : vector<8x128xf32>
    %30 = tpu.matmul %29, %3, %cst_21 {dimension_numbers = #tpu.dot_dimension_numbers<[1], [0], [0], [1], [0, 0, 1, 1], [], []>} : vector<8x16xbf16>, vector<16x128xbf16>, vector<8x128xf32> -> vector<8x128xf32>
    %31 = vector.broadcast %5 : vector<1x128xf32> to vector<8x128xf32>
    %32 = arith.addf %30, %31 : vector<8x128xf32>
    %c24 = arith.constant 24 : index
    %c0_22 = arith.constant 0 : index
    %33 = vector.load %arg11[%c24, %c0_22] : memref<64x128xf32, #tpu.memory_space<vmem>>, vector<8x128xf32>
    tpu.vector_store %arg11[%c24, %c0_22], %32 {strides = array<i32>} : memref<64x128xf32, #tpu.memory_space<vmem>>, vector<8x128xf32>,
    %c4 = arith.constant 4 : index
    %c0_23 = arith.constant 0 : index
    %c0_24 = arith.constant 0 : index
    %34 = vector.load %arg2[%c4, %c0_23, %c0_24] : memref<8x8x16xf32, #tpu.memory_space<vmem>>, vector<1x8x16xf32>
    %35 = vector.shape_cast %34 : vector<1x8x16xf32> to vector<8x16xf32>
    %36 = arith.truncf %35 : vector<8x16xf32> to vector<8x16xbf16>
    %cst_25 = arith.constant dense<0.000000e+00> : vector<8x128xf32>
    %37 = tpu.matmul %36, %3, %cst_25 {dimension_numbers = #tpu.dot_dimension_numbers<[1], [0], [0], [1], [0, 0, 1, 1], [], []>} : vector<8x16xbf16>, vector<16x128xbf16>, vector<8x128xf32> -> vector<8x128xf32>
    %38 = vector.broadcast %5 : vector<1x128xf32> to vector<8x128xf32>
    %39 = arith.addf %37, %38 : vector<8x128xf32>
    %c32 = arith.constant 32 : index
    %c0_26 = arith.constant 0 : index
    %40 = vector.load %arg11[%c32, %c0_26] : memref<64x128xf32, #tpu.memory_space<vmem>>, vector<8x128xf32>
    tpu.vector_store %arg11[%c32, %c0_26], %39 {strides = array<i32>} : memref<64x128xf32, #tpu.memory_space<vmem>>, vector<8x128xf32>,
    %c5 = arith.constant 5 : index
    %c0_27 = arith.constant 0 : index
    %c0_28 = arith.constant 0 : index
    %41 = vector.load %arg2[%c5, %c0_27, %c0_28] : memref<8x8x16xf32, #tpu.memory_space<vmem>>, vector<1x8x16xf32>
    %42 = vector.shape_cast %41 : vector<1x8x16xf32> to vector<8x16xf32>
    %43 = arith.truncf %42 : vector<8x16xf32> to vector<8x16xbf16>
    %cst_29 = arith.constant dense<0.000000e+00> : vector<8x128xf32>
    %44 = tpu.matmul %43, %3, %cst_29 {dimension_numbers = #tpu.dot_dimension_numbers<[1], [0], [0], [1], [0, 0, 1, 1], [], []>} : vector<8x16xbf16>, vector<16x128xbf16>, vector<8x128xf32> -> vector<8x128xf32>
    %45 = vector.broadcast %5 : vector<1x128xf32> to vector<8x128xf32>
    %46 = arith.addf %44, %45 : vector<8x128xf32>
    %c40 = arith.constant 40 : index
    %c0_30 = arith.constant 0 : index
    %47 = vector.load %arg11[%c40, %c0_30] : memref<64x128xf32, #tpu.memory_space<vmem>>, vector<8x128xf32>
    tpu.vector_store %arg11[%c40, %c0_30], %46 {strides = array<i32>} : memref<64x128xf32, #tpu.memory_space<vmem>>, vector<8x128xf32>,
    %c6 = arith.constant 6 : index
    %c0_31 = arith.constant 0 : index
    %c0_32 = arith.constant 0 : index
    %48 = vector.load %arg2[%c6, %c0_31, %c0_32] : memref<8x8x16xf32, #tpu.memory_space<vmem>>, vector<1x8x16xf32>
    %49 = vector.shape_cast %48 : vector<1x8x16xf32> to vector<8x16xf32>
    %50 = arith.truncf %49 : vector<8x16xf32> to vector<8x16xbf16>
    %cst_33 = arith.constant dense<0.000000e+00> : vector<8x128xf32>
    %51 = tpu.matmul %50, %3, %cst_33 {dimension_numbers = #tpu.dot_dimension_numbers<[1], [0], [0], [1], [0, 0, 1, 1], [], []>} : vector<8x16xbf16>, vector<16x128xbf16>, vector<8x128xf32> -> vector<8x128xf32>
    %52 = vector.broadcast %5 : vector<1x128xf32> to vector<8x128xf32>
    %53 = arith.addf %51, %52 : vector<8x128xf32>
    %c48 = arith.constant 48 : index
    %c0_34 = arith.constant 0 : index
    %54 = vector.load %arg11[%c48, %c0_34] : memref<64x128xf32, #tpu.memory_space<vmem>>, vector<8x128xf32>
    tpu.vector_store %arg11[%c48, %c0_34], %53 {strides = array<i32>} : memref<64x128xf32, #tpu.memory_space<vmem>>, vector<8x128xf32>,
    %c7 = arith.constant 7 : index
    %c0_35 = arith.constant 0 : index
    %c0_36 = arith.constant 0 : index
    %55 = vector.load %arg2[%c7, %c0_35, %c0_36] : memref<8x8x16xf32, #tpu.memory_space<vmem>>, vector<1x8x16xf32>
    %56 = vector.shape_cast %55 : vector<1x8x16xf32> to vector<8x16xf32>
    %57 = arith.truncf %56 : vector<8x16xf32> to vector<8x16xbf16>
    %cst_37 = arith.constant dense<0.000000e+00> : vector<8x128xf32>
    %58 = tpu.matmul %57, %3, %cst_37 {dimension_numbers = #tpu.dot_dimension_numbers<[1], [0], [0], [1], [0, 0, 1, 1], [], []>} : vector<8x16xbf16>, vector<16x128xbf16>, vector<8x128xf32> -> vector<8x128xf32>
    %59 = vector.broadcast %5 : vector<1x128xf32> to vector<8x128xf32>
    %60 = arith.addf %58, %59 : vector<8x128xf32>
    %c56 = arith.constant 56 : index
    %c0_38 = arith.constant 0 : index
    %61 = vector.load %arg11[%c56, %c0_38] : memref<64x128xf32, #tpu.memory_space<vmem>>, vector<8x128xf32>
    tpu.vector_store %arg11[%c56, %c0_38], %60 {strides = array<i32>} : memref<64x128xf32, #tpu.memory_space<vmem>>, vector<8x128xf32>,
    %c0_39 = arith.constant 0 : index
    %c0_40 = arith.constant 0 : index
    %62 = vector.load %arg9[%c0_39, %c0_40] : memref<8x32xf32, #tpu.memory_space<vmem>>, vector<8x32xf32>
    %c0_41 = arith.constant 0 : index
    %c0_42 = arith.constant 0 : index
    %63 = vector.load %arg10[%c0_41, %c0_42] : memref<8x32xf32, #tpu.memory_space<vmem>>, vector<8x32xf32>
    %c0_i32_43 = arith.constant 0 : i32
    %c8_i32 = arith.constant 8 : i32
    %64 = arith.muli %c0_i32_43, %c8_i32 : i32
    %65 = tpu.assume_multiple %64, 8 : i32
    %66 = arith.index_cast %65 : i32 to index
    %c0_44 = arith.constant 0 : index
    %67 = vector.load %arg11[%66, %c0_44] : memref<64x128xf32, #tpu.memory_space<vmem>>, vector<8x128xf32>
    %68 = arith.truncf %62 : vector<8x32xf32> to vector<8x32xbf16>
    %cst_45 = arith.constant dense<0.000000e+00> : vector<8x128xf32>
    %69 = tpu.matmul %68, %4, %cst_45 {dimension_numbers = #tpu.dot_dimension_numbers<[1], [0], [0], [1], [0, 0, 1, 1], [], []>} : vector<8x32xbf16>, vector<32x128xbf16>, vector<8x128xf32> -> vector<8x128xf32>
    %70 = arith.addf %67, %69 : vector<8x128xf32>
    %71 = vector.extract_strided_slice %70 {offsets = [0, 0], sizes = [8, 96], strides = [1, 1]} : vector<8x128xf32> to vector<8x96xf32>
    %72 = arith.negf %71 : vector<8x96xf32>
    %73 = math.exp %72 : vector<8x96xf32>
    %cst_46 = arith.constant 1.000000e+00 : f32
    %74 = vector.broadcast %cst_46 : f32 to vector<8x96xf32>
    %75 = arith.addf %74, %73 : vector<8x96xf32>
    %76 = arith.divf %74, %75 : vector<8x96xf32>
    %77 = vector.extract_strided_slice %70 {offsets = [0, 96], sizes = [8, 32], strides = [1, 1]} : vector<8x128xf32> to vector<8x32xf32>
    %78 = math.tanh %77 : vector<8x32xf32>
    %79 = vector.extract_strided_slice %76 {offsets = [0, 0], sizes = [8, 32], strides = [1, 1]} : vector<8x96xf32> to vector<8x32xf32>
    %80 = vector.extract_strided_slice %76 {offsets = [0, 32], sizes = [8, 32], strides = [1, 1]} : vector<8x96xf32> to vector<8x32xf32>
    %81 = vector.extract_strided_slice %76 {offsets = [0, 64], sizes = [8, 32], strides = [1, 1]} : vector<8x96xf32> to vector<8x32xf32>
    %82 = arith.mulf %80, %63 : vector<8x32xf32>
    %83 = arith.mulf %79, %78 : vector<8x32xf32>
    %84 = arith.addf %82, %83 : vector<8x32xf32>
    %85 = math.tanh %84 : vector<8x32xf32>
    %86 = arith.mulf %81, %85 : vector<8x32xf32>
    %87 = arith.truncf %86 : vector<8x32xf32> to vector<8x32xbf16>
    %88 = arith.index_cast %c0_i32_43 : i32 to index
    %c0_47 = arith.constant 0 : index
    %c0_48 = arith.constant 0 : index
    %89 = vector.load %arg6[%88, %c0_47, %c0_48] : memref<8x8x32xbf16, #tpu.memory_space<vmem>>, vector<1x8x32xbf16>
    %90 = vector.shape_cast %89 : vector<1x8x32xbf16> to vector<8x32xbf16>
    %91 = vector.shape_cast %87 : vector<8x32xbf16> to vector<1x8x32xbf16>
    tpu.vector_store %arg6[%88, %c0_47, %c0_48], %91 {strides = array<i32>} : memref<8x8x32xbf16, #tpu.memory_space<vmem>>, vector<1x8x32xbf16>,
    %c1_i32 = arith.constant 1 : i32
    %c8_i32_49 = arith.constant 8 : i32
    %92 = arith.muli %c1_i32, %c8_i32_49 : i32
    %93 = tpu.assume_multiple %92, 8 : i32
    %94 = arith.index_cast %93 : i32 to index
    %c0_50 = arith.constant 0 : index
    %95 = vector.load %arg11[%94, %c0_50] : memref<64x128xf32, #tpu.memory_space<vmem>>, vector<8x128xf32>
    %96 = arith.truncf %86 : vector<8x32xf32> to vector<8x32xbf16>
    %cst_51 = arith.constant dense<0.000000e+00> : vector<8x128xf32>
    %97 = tpu.matmul %96, %4, %cst_51 {dimension_numbers = #tpu.dot_dimension_numbers<[1], [0], [0], [1], [0, 0, 1, 1], [], []>} : vector<8x32xbf16>, vector<32x128xbf16>, vector<8x128xf32> -> vector<8x128xf32>
    %98 = arith.addf %95, %97 : vector<8x128xf32>
    %99 = vector.extract_strided_slice %98 {offsets = [0, 0], sizes = [8, 96], strides = [1, 1]} : vector<8x128xf32> to vector<8x96xf32>
    %100 = arith.negf %99 : vector<8x96xf32>
    %101 = math.exp %100 : vector<8x96xf32>
    %cst_52 = arith.constant 1.000000e+00 : f32
    %102 = vector.broadcast %cst_52 : f32 to vector<8x96xf32>
    %103 = arith.addf %102, %101 : vector<8x96xf32>
    %104 = arith.divf %102, %103 : vector<8x96xf32>
    %105 = vector.extract_strided_slice %98 {offsets = [0, 96], sizes = [8, 32], strides = [1, 1]} : vector<8x128xf32> to vector<8x32xf32>
    %106 = math.tanh %105 : vector<8x32xf32>
    %107 = vector.extract_strided_slice %104 {offsets = [0, 0], sizes = [8, 32], strides = [1, 1]} : vector<8x96xf32> to vector<8x32xf32>
    %108 = vector.extract_strided_slice %104 {offsets = [0, 32], sizes = [8, 32], strides = [1, 1]} : vector<8x96xf32> to vector<8x32xf32>
    %109 = vector.extract_strided_slice %104 {offsets = [0, 64], sizes = [8, 32], strides = [1, 1]} : vector<8x96xf32> to vector<8x32xf32>
    %110 = arith.mulf %108, %84 : vector<8x32xf32>
    %111 = arith.mulf %107, %106 : vector<8x32xf32>
    %112 = arith.addf %110, %111 : vector<8x32xf32>
    %113 = math.tanh %112 : vector<8x32xf32>
    %114 = arith.mulf %109, %113 : vector<8x32xf32>
    %115 = arith.truncf %114 : vector<8x32xf32> to vector<8x32xbf16>
    %116 = arith.index_cast %c1_i32 : i32 to index
    %c0_53 = arith.constant 0 : index
    %c0_54 = arith.constant 0 : index
    %117 = vector.load %arg6[%116, %c0_53, %c0_54] : memref<8x8x32xbf16, #tpu.memory_space<vmem>>, vector<1x8x32xbf16>
    %118 = vector.shape_cast %117 : vector<1x8x32xbf16> to vector<8x32xbf16>
    %119 = vector.shape_cast %115 : vector<8x32xbf16> to vector<1x8x32xbf16>
    tpu.vector_store %arg6[%116, %c0_53, %c0_54], %119 {strides = array<i32>} : memref<8x8x32xbf16, #tpu.memory_space<vmem>>, vector<1x8x32xbf16>,
    %c2_i32 = arith.constant 2 : i32
    %c8_i32_55 = arith.constant 8 : i32
    %120 = arith.muli %c2_i32, %c8_i32_55 : i32
    %121 = tpu.assume_multiple %120, 8 : i32
    %122 = arith.index_cast %121 : i32 to index
    %c0_56 = arith.constant 0 : index
    %123 = vector.load %arg11[%122, %c0_56] : memref<64x128xf32, #tpu.memory_space<vmem>>, vector<8x128xf32>
    %124 = arith.truncf %114 : vector<8x32xf32> to vector<8x32xbf16>
    %cst_57 = arith.constant dense<0.000000e+00> : vector<8x128xf32>
    %125 = tpu.matmul %124, %4, %cst_57 {dimension_numbers = #tpu.dot_dimension_numbers<[1], [0], [0], [1], [0, 0, 1, 1], [], []>} : vector<8x32xbf16>, vector<32x128xbf16>, vector<8x128xf32> -> vector<8x128xf32>
    %126 = arith.addf %123, %125 : vector<8x128xf32>
    %127 = vector.extract_strided_slice %126 {offsets = [0, 0], sizes = [8, 96], strides = [1, 1]} : vector<8x128xf32> to vector<8x96xf32>
    %128 = arith.negf %127 : vector<8x96xf32>
    %129 = math.exp %128 : vector<8x96xf32>
    %cst_58 = arith.constant 1.000000e+00 : f32
    %130 = vector.broadcast %cst_58 : f32 to vector<8x96xf32>
    %131 = arith.addf %130, %129 : vector<8x96xf32>
    %132 = arith.divf %130, %131 : vector<8x96xf32>
    %133 = vector.extract_strided_slice %126 {offsets = [0, 96], sizes = [8, 32], strides = [1, 1]} : vector<8x128xf32> to vector<8x32xf32>
    %134 = math.tanh %133 : vector<8x32xf32>
    %135 = vector.extract_strided_slice %132 {offsets = [0, 0], sizes = [8, 32], strides = [1, 1]} : vector<8x96xf32> to vector<8x32xf32>
    %136 = vector.extract_strided_slice %132 {offsets = [0, 32], sizes = [8, 32], strides = [1, 1]} : vector<8x96xf32> to vector<8x32xf32>
    %137 = vector.extract_strided_slice %132 {offsets = [0, 64], sizes = [8, 32], strides = [1, 1]} : vector<8x96xf32> to vector<8x32xf32>
    %138 = arith.mulf %136, %112 : vector<8x32xf32>
    %139 = arith.mulf %135, %134 : vector<8x32xf32>
    %140 = arith.addf %138, %139 : vector<8x32xf32>
    %141 = math.tanh %140 : vector<8x32xf32>
    %142 = arith.mulf %137, %141 : vector<8x32xf32>
    %143 = arith.truncf %142 : vector<8x32xf32> to vector<8x32xbf16>
    %144 = arith.index_cast %c2_i32 : i32 to index
    %c0_59 = arith.constant 0 : index
    %c0_60 = arith.constant 0 : index
    %145 = vector.load %arg6[%144, %c0_59, %c0_60] : memref<8x8x32xbf16, #tpu.memory_space<vmem>>, vector<1x8x32xbf16>
    %146 = vector.shape_cast %145 : vector<1x8x32xbf16> to vector<8x32xbf16>
    %147 = vector.shape_cast %143 : vector<8x32xbf16> to vector<1x8x32xbf16>
    tpu.vector_store %arg6[%144, %c0_59, %c0_60], %147 {strides = array<i32>} : memref<8x8x32xbf16, #tpu.memory_space<vmem>>, vector<1x8x32xbf16>,
    %c3_i32 = arith.constant 3 : i32
    %c8_i32_61 = arith.constant 8 : i32
    %148 = arith.muli %c3_i32, %c8_i32_61 : i32
    %149 = tpu.assume_multiple %148, 8 : i32
    %150 = arith.index_cast %149 : i32 to index
    %c0_62 = arith.constant 0 : index
    %151 = vector.load %arg11[%150, %c0_62] : memref<64x128xf32, #tpu.memory_space<vmem>>, vector<8x128xf32>
    %152 = arith.truncf %142 : vector<8x32xf32> to vector<8x32xbf16>
    %cst_63 = arith.constant dense<0.000000e+00> : vector<8x128xf32>
    %153 = tpu.matmul %152, %4, %cst_63 {dimension_numbers = #tpu.dot_dimension_numbers<[1], [0], [0], [1], [0, 0, 1, 1], [], []>} : vector<8x32xbf16>, vector<32x128xbf16>, vector<8x128xf32> -> vector<8x128xf32>
    %154 = arith.addf %151, %153 : vector<8x128xf32>
    %155 = vector.extract_strided_slice %154 {offsets = [0, 0], sizes = [8, 96], strides = [1, 1]} : vector<8x128xf32> to vector<8x96xf32>
    %156 = arith.negf %155 : vector<8x96xf32>
    %157 = math.exp %156 : vector<8x96xf32>
    %cst_64 = arith.constant 1.000000e+00 : f32
    %158 = vector.broadcast %cst_64 : f32 to vector<8x96xf32>
    %159 = arith.addf %158, %157 : vector<8x96xf32>
    %160 = arith.divf %158, %159 : vector<8x96xf32>
    %161 = vector.extract_strided_slice %154 {offsets = [0, 96], sizes = [8, 32], strides = [1, 1]} : vector<8x128xf32> to vector<8x32xf32>
    %162 = math.tanh %161 : vector<8x32xf32>
    %163 = vector.extract_strided_slice %160 {offsets = [0, 0], sizes = [8, 32], strides = [1, 1]} : vector<8x96xf32> to vector<8x32xf32>
    %164 = vector.extract_strided_slice %160 {offsets = [0, 32], sizes = [8, 32], strides = [1, 1]} : vector<8x96xf32> to vector<8x32xf32>
    %165 = vector.extract_strided_slice %160 {offsets = [0, 64], sizes = [8, 32], strides = [1, 1]} : vector<8x96xf32> to vector<8x32xf32>
    %166 = arith.mulf %164, %140 : vector<8x32xf32>
    %167 = arith.mulf %163, %162 : vector<8x32xf32>
    %168 = arith.addf %166, %167 : vector<8x32xf32>
    %169 = math.tanh %168 : vector<8x32xf32>
    %170 = arith.mulf %165, %169 : vector<8x32xf32>
    %171 = arith.truncf %170 : vector<8x32xf32> to vector<8x32xbf16>
    %172 = arith.index_cast %c3_i32 : i32 to index
    %c0_65 = arith.constant 0 : index
    %c0_66 = arith.constant 0 : index
    %173 = vector.load %arg6[%172, %c0_65, %c0_66] : memref<8x8x32xbf16, #tpu.memory_space<vmem>>, vector<1x8x32xbf16>
    %174 = vector.shape_cast %173 : vector<1x8x32xbf16> to vector<8x32xbf16>
    %175 = vector.shape_cast %171 : vector<8x32xbf16> to vector<1x8x32xbf16>
    tpu.vector_store %arg6[%172, %c0_65, %c0_66], %175 {strides = array<i32>} : memref<8x8x32xbf16, #tpu.memory_space<vmem>>, vector<1x8x32xbf16>,
    %c4_i32 = arith.constant 4 : i32
    %c8_i32_67 = arith.constant 8 : i32
    %176 = arith.muli %c4_i32, %c8_i32_67 : i32
    %177 = tpu.assume_multiple %176, 8 : i32
    %178 = arith.index_cast %177 : i32 to index
    %c0_68 = arith.constant 0 : index
    %179 = vector.load %arg11[%178, %c0_68] : memref<64x128xf32, #tpu.memory_space<vmem>>, vector<8x128xf32>
    %180 = arith.truncf %170 : vector<8x32xf32> to vector<8x32xbf16>
    %cst_69 = arith.constant dense<0.000000e+00> : vector<8x128xf32>
    %181 = tpu.matmul %180, %4, %cst_69 {dimension_numbers = #tpu.dot_dimension_numbers<[1], [0], [0], [1], [0, 0, 1, 1], [], []>} : vector<8x32xbf16>, vector<32x128xbf16>, vector<8x128xf32> -> vector<8x128xf32>
    %182 = arith.addf %179, %181 : vector<8x128xf32>
    %183 = vector.extract_strided_slice %182 {offsets = [0, 0], sizes = [8, 96], strides = [1, 1]} : vector<8x128xf32> to vector<8x96xf32>
    %184 = arith.negf %183 : vector<8x96xf32>
    %185 = math.exp %184 : vector<8x96xf32>
    %cst_70 = arith.constant 1.000000e+00 : f32
    %186 = vector.broadcast %cst_70 : f32 to vector<8x96xf32>
    %187 = arith.addf %186, %185 : vector<8x96xf32>
    %188 = arith.divf %186, %187 : vector<8x96xf32>
    %189 = vector.extract_strided_slice %182 {offsets = [0, 96], sizes = [8, 32], strides = [1, 1]} : vector<8x128xf32> to vector<8x32xf32>
    %190 = math.tanh %189 : vector<8x32xf32>
    %191 = vector.extract_strided_slice %188 {offsets = [0, 0], sizes = [8, 32], strides = [1, 1]} : vector<8x96xf32> to vector<8x32xf32>
    %192 = vector.extract_strided_slice %188 {offsets = [0, 32], sizes = [8, 32], strides = [1, 1]} : vector<8x96xf32> to vector<8x32xf32>
    %193 = vector.extract_strided_slice %188 {offsets = [0, 64], sizes = [8, 32], strides = [1, 1]} : vector<8x96xf32> to vector<8x32xf32>
    %194 = arith.mulf %192, %168 : vector<8x32xf32>
    %195 = arith.mulf %191, %190 : vector<8x32xf32>
    %196 = arith.addf %194, %195 : vector<8x32xf32>
    %197 = math.tanh %196 : vector<8x32xf32>
    %198 = arith.mulf %193, %197 : vector<8x32xf32>
    %199 = arith.truncf %198 : vector<8x32xf32> to vector<8x32xbf16>
    %200 = arith.index_cast %c4_i32 : i32 to index
    %c0_71 = arith.constant 0 : index
    %c0_72 = arith.constant 0 : index
    %201 = vector.load %arg6[%200, %c0_71, %c0_72] : memref<8x8x32xbf16, #tpu.memory_space<vmem>>, vector<1x8x32xbf16>
    %202 = vector.shape_cast %201 : vector<1x8x32xbf16> to vector<8x32xbf16>
    %203 = vector.shape_cast %199 : vector<8x32xbf16> to vector<1x8x32xbf16>
    tpu.vector_store %arg6[%200, %c0_71, %c0_72], %203 {strides = array<i32>} : memref<8x8x32xbf16, #tpu.memory_space<vmem>>, vector<1x8x32xbf16>,
    %c5_i32 = arith.constant 5 : i32
    %c8_i32_73 = arith.constant 8 : i32
    %204 = arith.muli %c5_i32, %c8_i32_73 : i32
    %205 = tpu.assume_multiple %204, 8 : i32
    %206 = arith.index_cast %205 : i32 to index
    %c0_74 = arith.constant 0 : index
    %207 = vector.load %arg11[%206, %c0_74] : memref<64x128xf32, #tpu.memory_space<vmem>>, vector<8x128xf32>
    %208 = arith.truncf %198 : vector<8x32xf32> to vector<8x32xbf16>
    %cst_75 = arith.constant dense<0.000000e+00> : vector<8x128xf32>
    %209 = tpu.matmul %208, %4, %cst_75 {dimension_numbers = #tpu.dot_dimension_numbers<[1], [0], [0], [1], [0, 0, 1, 1], [], []>} : vector<8x32xbf16>, vector<32x128xbf16>, vector<8x128xf32> -> vector<8x128xf32>
    %210 = arith.addf %207, %209 : vector<8x128xf32>
    %211 = vector.extract_strided_slice %210 {offsets = [0, 0], sizes = [8, 96], strides = [1, 1]} : vector<8x128xf32> to vector<8x96xf32>
    %212 = arith.negf %211 : vector<8x96xf32>
    %213 = math.exp %212 : vector<8x96xf32>
    %cst_76 = arith.constant 1.000000e+00 : f32
    %214 = vector.broadcast %cst_76 : f32 to vector<8x96xf32>
    %215 = arith.addf %214, %213 : vector<8x96xf32>
    %216 = arith.divf %214, %215 : vector<8x96xf32>
    %217 = vector.extract_strided_slice %210 {offsets = [0, 96], sizes = [8, 32], strides = [1, 1]} : vector<8x128xf32> to vector<8x32xf32>
    %218 = math.tanh %217 : vector<8x32xf32>
    %219 = vector.extract_strided_slice %216 {offsets = [0, 0], sizes = [8, 32], strides = [1, 1]} : vector<8x96xf32> to vector<8x32xf32>
    %220 = vector.extract_strided_slice %216 {offsets = [0, 32], sizes = [8, 32], strides = [1, 1]} : vector<8x96xf32> to vector<8x32xf32>
    %221 = vector.extract_strided_slice %216 {offsets = [0, 64], sizes = [8, 32], strides = [1, 1]} : vector<8x96xf32> to vector<8x32xf32>
    %222 = arith.mulf %220, %196 : vector<8x32xf32>
    %223 = arith.mulf %219, %218 : vector<8x32xf32>
    %224 = arith.addf %222, %223 : vector<8x32xf32>
    %225 = math.tanh %224 : vector<8x32xf32>
    %226 = arith.mulf %221, %225 : vector<8x32xf32>
    %227 = arith.truncf %226 : vector<8x32xf32> to vector<8x32xbf16>
    %228 = arith.index_cast %c5_i32 : i32 to index
    %c0_77 = arith.constant 0 : index
    %c0_78 = arith.constant 0 : index
    %229 = vector.load %arg6[%228, %c0_77, %c0_78] : memref<8x8x32xbf16, #tpu.memory_space<vmem>>, vector<1x8x32xbf16>
    %230 = vector.shape_cast %229 : vector<1x8x32xbf16> to vector<8x32xbf16>
    %231 = vector.shape_cast %227 : vector<8x32xbf16> to vector<1x8x32xbf16>
    tpu.vector_store %arg6[%228, %c0_77, %c0_78], %231 {strides = array<i32>} : memref<8x8x32xbf16, #tpu.memory_space<vmem>>, vector<1x8x32xbf16>,
    %c6_i32 = arith.constant 6 : i32
    %c8_i32_79 = arith.constant 8 : i32
    %232 = arith.muli %c6_i32, %c8_i32_79 : i32
    %233 = tpu.assume_multiple %232, 8 : i32
    %234 = arith.index_cast %233 : i32 to index
    %c0_80 = arith.constant 0 : index
    %235 = vector.load %arg11[%234, %c0_80] : memref<64x128xf32, #tpu.memory_space<vmem>>, vector<8x128xf32>
    %236 = arith.truncf %226 : vector<8x32xf32> to vector<8x32xbf16>
    %cst_81 = arith.constant dense<0.000000e+00> : vector<8x128xf32>
    %237 = tpu.matmul %236, %4, %cst_81 {dimension_numbers = #tpu.dot_dimension_numbers<[1], [0], [0], [1], [0, 0, 1, 1], [], []>} : vector<8x32xbf16>, vector<32x128xbf16>, vector<8x128xf32> -> vector<8x128xf32>
    %238 = arith.addf %235, %237 : vector<8x128xf32>
    %239 = vector.extract_strided_slice %238 {offsets = [0, 0], sizes = [8, 96], strides = [1, 1]} : vector<8x128xf32> to vector<8x96xf32>
    %240 = arith.negf %239 : vector<8x96xf32>
    %241 = math.exp %240 : vector<8x96xf32>
    %cst_82 = arith.constant 1.000000e+00 : f32
    %242 = vector.broadcast %cst_82 : f32 to vector<8x96xf32>
    %243 = arith.addf %242, %241 : vector<8x96xf32>
    %244 = arith.divf %242, %243 : vector<8x96xf32>
    %245 = vector.extract_strided_slice %238 {offsets = [0, 96], sizes = [8, 32], strides = [1, 1]} : vector<8x128xf32> to vector<8x32xf32>
    %246 = math.tanh %245 : vector<8x32xf32>
    %247 = vector.extract_strided_slice %244 {offsets = [0, 0], sizes = [8, 32], strides = [1, 1]} : vector<8x96xf32> to vector<8x32xf32>
    %248 = vector.extract_strided_slice %244 {offsets = [0, 32], sizes = [8, 32], strides = [1, 1]} : vector<8x96xf32> to vector<8x32xf32>
    %249 = vector.extract_strided_slice %244 {offsets = [0, 64], sizes = [8, 32], strides = [1, 1]} : vector<8x96xf32> to vector<8x32xf32>
    %250 = arith.mulf %248, %224 : vector<8x32xf32>
    %251 = arith.mulf %247, %246 : vector<8x32xf32>
    %252 = arith.addf %250, %251 : vector<8x32xf32>
    %253 = math.tanh %252 : vector<8x32xf32>
    %254 = arith.mulf %249, %253 : vector<8x32xf32>
    %255 = arith.truncf %254 : vector<8x32xf32> to vector<8x32xbf16>
    %256 = arith.index_cast %c6_i32 : i32 to index
    %c0_83 = arith.constant 0 : index
    %c0_84 = arith.constant 0 : index
    %257 = vector.load %arg6[%256, %c0_83, %c0_84] : memref<8x8x32xbf16, #tpu.memory_space<vmem>>, vector<1x8x32xbf16>
    %258 = vector.shape_cast %257 : vector<1x8x32xbf16> to vector<8x32xbf16>
    %259 = vector.shape_cast %255 : vector<8x32xbf16> to vector<1x8x32xbf16>
    tpu.vector_store %arg6[%256, %c0_83, %c0_84], %259 {strides = array<i32>} : memref<8x8x32xbf16, #tpu.memory_space<vmem>>, vector<1x8x32xbf16>,
    %c7_i32 = arith.constant 7 : i32
    %c8_i32_85 = arith.constant 8 : i32
    %260 = arith.muli %c7_i32, %c8_i32_85 : i32
    %261 = tpu.assume_multiple %260, 8 : i32
    %262 = arith.index_cast %261 : i32 to index
    %c0_86 = arith.constant 0 : index
    %263 = vector.load %arg11[%262, %c0_86] : memref<64x128xf32, #tpu.memory_space<vmem>>, vector<8x128xf32>
    %264 = arith.truncf %254 : vector<8x32xf32> to vector<8x32xbf16>
    %cst_87 = arith.constant dense<0.000000e+00> : vector<8x128xf32>
    %265 = tpu.matmul %264, %4, %cst_87 {dimension_numbers = #tpu.dot_dimension_numbers<[1], [0], [0], [1], [0, 0, 1, 1], [], []>} : vector<8x32xbf16>, vector<32x128xbf16>, vector<8x128xf32> -> vector<8x128xf32>
    %266 = arith.addf %263, %265 : vector<8x128xf32>
    %267 = vector.extract_strided_slice %266 {offsets = [0, 0], sizes = [8, 96], strides = [1, 1]} : vector<8x128xf32> to vector<8x96xf32>
    %268 = arith.negf %267 : vector<8x96xf32>
    %269 = math.exp %268 : vector<8x96xf32>
    %cst_88 = arith.constant 1.000000e+00 : f32
    %270 = vector.broadcast %cst_88 : f32 to vector<8x96xf32>
    %271 = arith.addf %270, %269 : vector<8x96xf32>
    %272 = arith.divf %270, %271 : vector<8x96xf32>
    %273 = vector.extract_strided_slice %266 {offsets = [0, 96], sizes = [8, 32], strides = [1, 1]} : vector<8x128xf32> to vector<8x32xf32>
    %274 = math.tanh %273 : vector<8x32xf32>
    %275 = vector.extract_strided_slice %272 {offsets = [0, 0], sizes = [8, 32], strides = [1, 1]} : vector<8x96xf32> to vector<8x32xf32>
    %276 = vector.extract_strided_slice %272 {offsets = [0, 32], sizes = [8, 32], strides = [1, 1]} : vector<8x96xf32> to vector<8x32xf32>
    %277 = vector.extract_strided_slice %272 {offsets = [0, 64], sizes = [8, 32], strides = [1, 1]} : vector<8x96xf32> to vector<8x32xf32>
    %278 = arith.mulf %276, %252 : vector<8x32xf32>
    %279 = arith.mulf %275, %274 : vector<8x32xf32>
    %280 = arith.addf %278, %279 : vector<8x32xf32>
    %281 = math.tanh %280 : vector<8x32xf32>
    %282 = arith.mulf %277, %281 : vector<8x32xf32>
    %283 = arith.truncf %282 : vector<8x32xf32> to vector<8x32xbf16>
    %284 = arith.index_cast %c7_i32 : i32 to index
    %c0_89 = arith.constant 0 : index
    %c0_90 = arith.constant 0 : index
    %285 = vector.load %arg6[%284, %c0_89, %c0_90] : memref<8x8x32xbf16, #tpu.memory_space<vmem>>, vector<1x8x32xbf16>
    %286 = vector.shape_cast %285 : vector<1x8x32xbf16> to vector<8x32xbf16>
    %287 = vector.shape_cast %283 : vector<8x32xbf16> to vector<1x8x32xbf16>
    tpu.vector_store %arg6[%284, %c0_89, %c0_90], %287 {strides = array<i32>} : memref<8x8x32xbf16, #tpu.memory_space<vmem>>, vector<1x8x32xbf16>,
    %c8_i32_91 = arith.constant 8 : i32
    %c0_92 = arith.constant 0 : index
    %c0_93 = arith.constant 0 : index
    %288 = vector.load %arg9[%c0_92, %c0_93] : memref<8x32xf32, #tpu.memory_space<vmem>>, vector<8x32xf32>
    tpu.vector_store %arg9[%c0_92, %c0_93], %282 {strides = array<i32>} : memref<8x32xf32, #tpu.memory_space<vmem>>, vector<8x32xf32>,
    %c0_94 = arith.constant 0 : index
    %c0_95 = arith.constant 0 : index
    %289 = vector.load %arg10[%c0_94, %c0_95] : memref<8x32xf32, #tpu.memory_space<vmem>>, vector<8x32xf32>
    tpu.vector_store %arg10[%c0_94, %c0_95], %280 {strides = array<i32>} : memref<8x32xf32, #tpu.memory_space<vmem>>, vector<8x32xf32>,
    %c0_i32_96 = arith.constant 0 : i32
    %290 = arith.cmpi eq, %arg1, %c0_i32_96 : i32
    %291 = arith.extui %290 : i1 to i32
    %c0_i32_97 = arith.constant 0 : i32
    %292 = arith.cmpi ne, %291, %c0_i32_97 : i32
    scf.if %292 {
      %c0_98 = arith.constant 0 : index
      %c0_99 = arith.constant 0 : index
      %293 = vector.load %arg7[%c0_98, %c0_99] : memref<8x32xf32, #tpu.memory_space<vmem>>, vector<8x32xf32>
      tpu.vector_store %arg7[%c0_98, %c0_99], %282 {strides = array<i32>} : memref<8x32xf32, #tpu.memory_space<vmem>>, vector<8x32xf32>,
      %c0_100 = arith.constant 0 : index
      %c0_101 = arith.constant 0 : index
      %294 = vector.load %arg8[%c0_100, %c0_101] : memref<8x32xf32, #tpu.memory_space<vmem>>, vector<8x32xf32>
      tpu.vector_store %arg8[%c0_100, %c0_101], %280 {strides = array<i32>} : memref<8x32xf32, #tpu.memory_space<vmem>>, vector<8x32xf32>,
    } else {
    }
    return
  }
  func.func @transform_0(%arg0: i32, %arg1: i32) -> (i32, i32, i32) {
    %c0_i32 = arith.constant 0 : i32
    %c0_i32_0 = arith.constant 0 : i32
    return %arg1, %arg0, %c0_i32 : i32, i32, i32
  }
  func.func @transform_1(%arg0: i32, %arg1: i32) -> (i32, i32) {
    %c0_i32 = arith.constant 0 : i32
    %c0_i32_0 = arith.constant 0 : i32
    %c0_i32_1 = arith.constant 0 : i32
    return %c0_i32, %c0_i32_0 : i32, i32
  }
  func.func @transform_2(%arg0: i32, %arg1: i32) -> (i32, i32) {
    %c0_i32 = arith.constant 0 : i32
    %c0_i32_0 = arith.constant 0 : i32
    %c0_i32_1 = arith.constant 0 : i32
    return %c0_i32, %c0_i32_0 : i32, i32
  }
  func.func @transform_3(%arg0: i32, %arg1: i32) -> (i32, i32) {
    %c0_i32 = arith.constant 0 : i32
    %c0_i32_0 = arith.constant 0 : i32
    %c0_i32_1 = arith.constant 0 : i32
    return %c0_i32, %c0_i32_0 : i32, i32
  }
  func.func @transform_4(%arg0: i32, %arg1: i32) -> (i32, i32, i32) {
    %c0_i32 = arith.constant 0 : i32
    %c0_i32_0 = arith.constant 0 : i32
    return %arg1, %arg0, %c0_i32 : i32, i32, i32
  }
  func.func @transform_5(%arg0: i32, %arg1: i32) -> (i32, i32) {
    %c0_i32 = arith.constant 0 : i32
    %c0_i32_0 = arith.constant 0 : i32
    return %arg0, %c0_i32 : i32, i32
  }
  func.func @transform_6(%arg0: i32, %arg1: i32) -> (i32, i32) {
    %c0_i32 = arith.constant 0 : i32
    %c0_i32_0 = arith.constant 0 : i32
    return %arg0, %c0_i32 : i32, i32
  }
}

</mosaic_0001>

<llo_original>
// kernel: tpu_custom_call.1
$region0: #{tpu_custom_call.1}
  #allocation0 [shape = 'u32[]', space=smem, size = 0x4, offset = 0x4, fixed_abs, tag = 'smem constant byte address 0x4 - core index']
  #allocation1 [shape = 'u32[144,128]{1,0:T(1,128)}', space=vmem, size = 0x12000, scoped, tag = 'internal scratch']
  #allocation2 [shape = 'f32[8,32]{1,0:T(8,128)}', space=vmem, size = 0x1000, scoped, tag = 'scratch operand']
  #allocation3 [shape = 'f32[8,32]{1,0:T(8,128)}', space=vmem, size = 0x1000, scoped, tag = 'scratch operand']
  #allocation4 [shape = 'f32[64,128]{1,0:T(8,128)}', space=vmem, size = 0x8000, scoped, tag = 'scratch operand']
  %s0 = inlined_call_operand.hbm [shape: f32[8,8,16], index: 0, kind: input, shape index: {}]
  %s1 = inlined_call_operand.hbm [shape: bf16[16,128], index: 1, kind: input, shape index: {}]
  %s2 = inlined_call_operand.hbm [shape: bf16[32,128], index: 2, kind: input, shape index: {}]
  %s3 = inlined_call_operand.vmem [shape: f32[1,128], index: 3, kind: input, shape index: {}]
  %s4 = inlined_call_operand.hbm [shape: bf16[8,8,32], index: 4, kind: output, shape index: {0}]
  %s5 = inlined_call_operand.hbm [shape: f32[8,32], index: 5, kind: output, shape index: {1}]
  %s6 = inlined_call_operand.hbm [shape: f32[8,32], index: 6, kind: output, shape index: {2}]
  %7 = xla_tuple %s4, %s5, %s6
  %s8 = sld [smem:[#allocation0]]
  $region62: #{tpu_custom_call.1} parent=0
    _
  %s10 = ssub.s32 1, %s8
  %s11 = scalar_select 0, %s10, %s8
  $region1: #{tpu_custom_call.1} parent=0
    #allocation5 [shape = 'u8[32768]{0}', space=vmem, size = 0x8000, scoped, tag = 'input window, operand 0, single buffered']
    #allocation6 [shape = 's32[1]{0}', space=sflag, size = 0x4, scoped, tag = 'scoped memory for tpu_custom_call.1']
    #allocation7 [shape = 's32[1]{0}', space=sflag, size = 0x4, scoped, tag = 'scoped memory for tpu_custom_call.1']
    #allocation8 [shape = 'u8[4096]{0}', space=vmem, size = 0x1000, scoped, tag = 'input window, operand 1, single buffered']
    #allocation9 [shape = 's32[1]{0}', space=sflag, size = 0x4, scoped, tag = 'scoped memory for tpu_custom_call.1']
    #allocation10 [shape = 'u8[8192]{0}', space=vmem, size = 0x2000, scoped, tag = 'input window, operand 2, single buffered']
    #allocation11 [shape = 'u8[16384]{0}', space=vmem, size = 0x4000, scoped, tag = 'output window, operand 0, single buffered']
    #allocation12 [shape = 'u8[4096]{0}', space=vmem, size = 0x1000, scoped, tag = 'output window, operand 1, single buffered']
    #allocation13 [shape = 's32[1]{0}', space=sflag, size = 0x4, scoped, tag = 'scoped memory for tpu_custom_call.1']
    #allocation14 [shape = 'u8[4096]{0}', space=vmem, size = 0x1000, scoped, tag = 'output window, operand 2, single buffered']
    %12 = vsyncpa [#allocation6], 0
    %13 = vsyncpa [#allocation9], 0
    %14 = vsyncpa [#allocation7], 0
    %15 = vsyncpa [#allocation13], 0
    // Predicated region
    $region2: #{tpu_custom_call.1} parent=1 // pred_check
      _
    $region3: #{tpu_custom_call.1} parent=1 // pred_check_branch
      %17 = sbr.rel (0) target = $region5
    $region4: #{tpu_custom_call.1} parent=1 // pred_region
      %s19 = ssub.s32 1024, 1024
      %20 = vsyncadd [#allocation6], %s19
      %s21 = sshll.u32 [#allocation5], 4
      %s22 = int_to_ptr.vmem [resolvable:$true] %s21
      %27 = dma.hbm_to_vmem [thread:$0]  %s0, 1024, %s22, [#allocation6], 128, 128, 8
    $region5: #{tpu_custom_call.1} parent=1 // pred_fallthru
      _
    // Predicated region
    $region6: #{tpu_custom_call.1} parent=1 // pred_check
      _
    $region7: #{tpu_custom_call.1} parent=1 // pred_check_branch
      %29 = sbr.rel (0) target = $region9
    $region8: #{tpu_custom_call.1} parent=1 // pred_region
      %s31 = ssub.s32 128, 128
      %32 = vsyncadd [#allocation9], %s31
      %s33 = sshll.u32 [#allocation8], 4
      %s34 = int_to_ptr.vmem [resolvable:$true] %s33
      %39 = dma.hbm_to_vmem [thread:$0]  %s1, 128, %s34, [#allocation9], 64, 64, 4
    $region9: #{tpu_custom_call.1} parent=1 // pred_fallthru
      _
    // Predicated region
    $region10: #{tpu_custom_call.1} parent=1 // pred_check
      _
    $region11: #{tpu_custom_call.1} parent=1 // pred_check_branch
      %41 = sbr.rel (0) target = $region13
    $region12: #{tpu_custom_call.1} parent=1 // pred_region
      %s43 = ssub.s32 256, 256
      %44 = vsyncadd [#allocation9], %s43
      %s45 = sshll.u32 [#allocation10], 4
      %s46 = int_to_ptr.vmem [resolvable:$true] %s45
      %51 = dma.hbm_to_vmem [thread:$0]  %s2, 256, %s46, [#allocation9], 64, 64, 4
    $region13: #{tpu_custom_call.1} parent=1 // pred_fallthru
      _
    // Predicated region
    $region14: #{tpu_custom_call.1} parent=1 // pred_check
      _
    $region15: #{tpu_custom_call.1} parent=1 // pred_check_branch
      %53 = sbr.rel (0) target = $region17
    $region16: #{tpu_custom_call.1} parent=1 // pred_region
      _
    $region17: #{tpu_custom_call.1} parent=1 // pred_fallthru
      _
    // Predicated region
    $region18: #{tpu_custom_call.1} parent=1 // pred_check
      _
    $region19: #{tpu_custom_call.1} parent=1 // pred_check_branch
      %55 = sbr.rel (0) target = $region21
    $region20: #{tpu_custom_call.1} parent=1 // pred_region
      %56 = dma.done [#allocation6], 1024
    $region21: #{tpu_custom_call.1} parent=1 // pred_fallthru
      _
    // Predicated region
    $region22: #{tpu_custom_call.1} parent=1 // pred_check
      _
    $region23: #{tpu_custom_call.1} parent=1 // pred_check_branch
      %58 = sbr.rel (0) target = $region25
    $region24: #{tpu_custom_call.1} parent=1 // pred_region
      %59 = dma.done [#allocation9], 128
    $region25: #{tpu_custom_call.1} parent=1 // pred_fallthru
      _
    // Predicated region
    $region26: #{tpu_custom_call.1} parent=1 // pred_check
      _
    $region27: #{tpu_custom_call.1} parent=1 // pred_check_branch
      %61 = sbr.rel (0) target = $region29
    $region28: #{tpu_custom_call.1} parent=1 // pred_region
      %62 = dma.done [#allocation9], 256
    $region29: #{tpu_custom_call.1} parent=1 // pred_fallthru
      _
    %p64 = scmp.eq.s32.totalorder 0, 0
    // Predicated region
    $region30: #{tpu_custom_call.1} parent=1 // pred_check
      %p65 = pneg %p64
    $region31: #{tpu_custom_call.1} parent=1 // pred_check_branch
      %67 = sbr.rel (%p65) target = $region33
    $region32: #{tpu_custom_call.1} parent=1 // pred_region
      %vm68 = vcmask 261120
      %69 = vst.msk [vmem:[#allocation2] sm:$0xff] %vm68, 0.0
      %70 = vst.msk [vmem:[#allocation3] sm:$0xff] %vm68, 0.0
    $region33: #{tpu_custom_call.1} parent=1 // pred_fallthru
      _
    %v71 = vld [vmem:[#allocation8] sm:$0xf]
    %v72 = vld [vmem:[#allocation8 + $0x4] sm:$0xf]
    %v73 = vld [vmem:[#allocation10] sm:$0xf]
    %v74 = vld [vmem:[#allocation10 + $0x4] sm:$0xf]
    %v75 = vld [vmem:[#allocation10 + $0x8] sm:$0xf]
    %v76 = vld [vmem:[#allocation10 + $0xc] sm:$0xf]
    %v77 = vld [vmem:[%s3] sm:$0x1]
    %v78 = vld [vmem:[#allocation5] sm:$0xff]
    %v79 = vpack.c.bf16 %v78, %v78
    %v81 = vlaneseq
    %v82 = vshrl.u32 %v81, 7
    %v83 = vsub.s32 0, %v82
    %v84 = vrot.slane %v77, %v83
    %v88 = vunpack.c.l.b16 %v71
    %v89 = vunpack.c.l.b16 %v72
    %v90 = vpack.c.b16 %v89, %v88
    %vm92 = vcmask 130048
    %v94 = vsel %vm92, %v79, 0
    %96 = vmatprep.subr.bf16.mxu0 0
    %97 = vmatpush1.bf16.msra.mxu0 %v90
    %98 = vmatprep.subr.bf16.mxu0 0
    %99 = vmatpush1.bf16.msra.mxu0 0
    %100 = vmatprep.subr.bf16.mxu0 0
    %101 = vmatpush1.bf16.msra.mxu0 0
    %102 = vmatprep.subr.bf16.mxu0 0
    %103 = vmatpush1.bf16.msra.mxu0 0
    %104 = vmatprep.subr.bf16.mxu0 0
    %105 = vmatpush1.bf16.msra.mxu0 0
    %106 = vmatprep.subr.bf16.mxu0 0
    %107 = vmatpush1.bf16.msra.mxu0 0
    %108 = vmatprep.subr.bf16.mxu0 0
    %109 = vmatpush1.bf16.msra.mxu0 0
    %110 = vmatprep.subr.bf16.mxu0 0
    %111 = vmatpush1.bf16.msra.mxu0 0
    %112 = vmatprep.subr.bf16.mxu0 0
    %113 = vmatpush1.bf16.msra.mxu0 0
    %114 = vmatprep.subr.bf16.mxu0 0
    %115 = vmatpush1.bf16.msra.mxu0 0
    %116 = vmatprep.subr.bf16.mxu0 0
    %117 = vmatpush1.bf16.msra.mxu0 0
    %118 = vmatprep.subr.bf16.mxu0 0
    %119 = vmatpush1.bf16.msra.mxu0 0
    %120 = vmatprep.subr.bf16.mxu0 0
    %121 = vmatpush1.bf16.msra.mxu0 0
    %122 = vmatprep.subr.bf16.mxu0 0
    %123 = vmatpush1.bf16.msra.mxu0 0
    %124 = vmatprep.subr.bf16.mxu0 0
    %125 = vmatpush1.bf16.msra.mxu0 0
    %126 = vmatprep.subr.bf16.mxu0 0
    %127 = vmatpush1.bf16.msra.mxu0 0
    %128 = vmatprep.mubr.bf16.mxu0 0
    %129 = vmatmul.mubr.bf16.gmra.mrb[0].mxu0 %v94
    %v130 = vpop.f32.mrb[0].mxu0
    %v131 = vadd.f32 %v84, %v130
    %v132 = vpop.f32.mrb[0].mxu0
    %v133 = vpop.f32.mrb[0].mxu0
    %v134 = vpop.f32.mrb[0].mxu0
    %135 = vdwg.mxu0
    %136 = vst [vmem:[#allocation4] sm:$0xff] %v131
    %s137 = scalar_lea.vmem [#allocation5], 8
    %v138 = vld [vmem:[%s137] sm:$0xff]
    %v139 = vpack.c.bf16 %v138, %v138
    %v141 = vsel %vm92, %v139, 0
    %143 = vmatprep.subr.bf16.mxu0 0
    %144 = vmatpush1.bf16.msra.mxu0 %v90
    %145 = vmatprep.subr.bf16.mxu0 0
    %146 = vmatpush1.bf16.msra.mxu0 0
    %147 = vmatprep.subr.bf16.mxu0 0
    %148 = vmatpush1.bf16.msra.mxu0 0
    %149 = vmatprep.subr.bf16.mxu0 0
    %150 = vmatpush1.bf16.msra.mxu0 0
    %151 = vmatprep.subr.bf16.mxu0 0
    %152 = vmatpush1.bf16.msra.mxu0 0
    %153 = vmatprep.subr.bf16.mxu0 0
    %154 = vmatpush1.bf16.msra.mxu0 0
    %155 = vmatprep.subr.bf16.mxu0 0
    %156 = vmatpush1.bf16.msra.mxu0 0
    %157 = vmatprep.subr.bf16.mxu0 0
    %158 = vmatpush1.bf16.msra.mxu0 0
    %159 = vmatprep.subr.bf16.mxu0 0
    %160 = vmatpush1.bf16.msra.mxu0 0
    %161 = vmatprep.subr.bf16.mxu0 0
    %162 = vmatpush1.bf16.msra.mxu0 0
    %163 = vmatprep.subr.bf16.mxu0 0
    %164 = vmatpush1.bf16.msra.mxu0 0
    %165 = vmatprep.subr.bf16.mxu0 0
    %166 = vmatpush1.bf16.msra.mxu0 0
    %167 = vmatprep.subr.bf16.mxu0 0
    %168 = vmatpush1.bf16.msra.mxu0 0
    %169 = vmatprep.subr.bf16.mxu0 0
    %170 = vmatpush1.bf16.msra.mxu0 0
    %171 = vmatprep.subr.bf16.mxu0 0
    %172 = vmatpush1.bf16.msra.mxu0 0
    %173 = vmatprep.subr.bf16.mxu0 0
    %174 = vmatpush1.bf16.msra.mxu0 0
    %175 = vmatprep.mubr.bf16.mxu0 0
    %176 = vmatmul.mubr.bf16.gmra.mrb[0].mxu0 %v141
    %v177 = vpop.f32.mrb[0].mxu0
    %v178 = vadd.f32 %v84, %v177
    %v179 = vpop.f32.mrb[0].mxu0
    %v180 = vpop.f32.mrb[0].mxu0
    %v181 = vpop.f32.mrb[0].mxu0
    %182 = vdwg.mxu0
    %183 = vst [vmem:[#allocation4 + $0x8] sm:$0xff] %v178
    %s184 = scalar_lea.vmem [#allocation5], 16
    %v185 = vld [vmem:[%s184] sm:$0xff]
    %v186 = vpack.c.bf16 %v185, %v185
    %v188 = vsel %vm92, %v186, 0
    %190 = vmatprep.subr.bf16.mxu0 0
    %191 = vmatpush1.bf16.msra.mxu0 %v90
    %192 = vmatprep.subr.bf16.mxu0 0
    %193 = vmatpush1.bf16.msra.mxu0 0
    %194 = vmatprep.subr.bf16.mxu0 0
    %195 = vmatpush1.bf16.msra.mxu0 0
    %196 = vmatprep.subr.bf16.mxu0 0
    %197 = vmatpush1.bf16.msra.mxu0 0
    %198 = vmatprep.subr.bf16.mxu0 0
    %199 = vmatpush1.bf16.msra.mxu0 0
    %200 = vmatprep.subr.bf16.mxu0 0
    %201 = vmatpush1.bf16.msra.mxu0 0
    %202 = vmatprep.subr.bf16.mxu0 0
    %203 = vmatpush1.bf16.msra.mxu0 0
    %204 = vmatprep.subr.bf16.mxu0 0
    %205 = vmatpush1.bf16.msra.mxu0 0
    %206 = vmatprep.subr.bf16.mxu0 0
    %207 = vmatpush1.bf16.msra.mxu0 0
    %208 = vmatprep.subr.bf16.mxu0 0
    %209 = vmatpush1.bf16.msra.mxu0 0
    %210 = vmatprep.subr.bf16.mxu0 0
    %211 = vmatpush1.bf16.msra.mxu0 0
    %212 = vmatprep.subr.bf16.mxu0 0
    %213 = vmatpush1.bf16.msra.mxu0 0
    %214 = vmatprep.subr.bf16.mxu0 0
    %215 = vmatpush1.bf16.msra.mxu0 0
    %216 = vmatprep.subr.bf16.mxu0 0
    %217 = vmatpush1.bf16.msra.mxu0 0
    %218 = vmatprep.subr.bf16.mxu0 0
    %219 = vmatpush1.bf16.msra.mxu0 0
    %220 = vmatprep.subr.bf16.mxu0 0
    %221 = vmatpush1.bf16.msra.mxu0 0
    %222 = vmatprep.mubr.bf16.mxu0 0
    %223 = vmatmul.mubr.bf16.gmra.mrb[0].mxu0 %v188
    %v224 = vpop.f32.mrb[0].mxu0
    %v225 = vadd.f32 %v84, %v224
    %v226 = vpop.f32.mrb[0].mxu0
    %v227 = vpop.f32.mrb[0].mxu0
    %v228 = vpop.f32.mrb[0].mxu0
    %229 = vdwg.mxu0
    %230 = vst [vmem:[#allocation4 + $0x10] sm:$0xff] %v225
    %s231 = scalar_lea.vmem [#allocation5], 24
    %v232 = vld [vmem:[%s231] sm:$0xff]
    %v233 = vpack.c.bf16 %v232, %v232
    %v235 = vsel %vm92, %v233, 0
    %237 = vmatprep.subr.bf16.mxu0 0
    %238 = vmatpush1.bf16.msra.mxu0 %v90
    %239 = vmatprep.subr.bf16.mxu0 0
    %240 = vmatpush1.bf16.msra.mxu0 0
    %241 = vmatprep.subr.bf16.mxu0 0
    %242 = vmatpush1.bf16.msra.mxu0 0
    %243 = vmatprep.subr.bf16.mxu0 0
    %244 = vmatpush1.bf16.msra.mxu0 0
    %245 = vmatprep.subr.bf16.mxu0 0
    %246 = vmatpush1.bf16.msra.mxu0 0
    %247 = vmatprep.subr.bf16.mxu0 0
    %248 = vmatpush1.bf16.msra.mxu0 0
    %249 = vmatprep.subr.bf16.mxu0 0
    %250 = vmatpush1.bf16.msra.mxu0 0
    %251 = vmatprep.subr.bf16.mxu0 0
    %252 = vmatpush1.bf16.msra.mxu0 0
    %253 = vmatprep.subr.bf16.mxu0 0
    %254 = vmatpush1.bf16.msra.mxu0 0
    %255 = vmatprep.subr.bf16.mxu0 0
    %256 = vmatpush1.bf16.msra.mxu0 0
    %257 = vmatprep.subr.bf16.mxu0 0
    %258 = vmatpush1.bf16.msra.mxu0 0
    %259 = vmatprep.subr.bf16.mxu0 0
    %260 = vmatpush1.bf16.msra.mxu0 0
    %261 = vmatprep.subr.bf16.mxu0 0
    %262 = vmatpush1.bf16.msra.mxu0 0
    %263 = vmatprep.subr.bf16.mxu0 0
    %264 = vmatpush1.bf16.msra.mxu0 0
    %265 = vmatprep.subr.bf16.mxu0 0
    %266 = vmatpush1.bf16.msra.mxu0 0
    %267 = vmatprep.subr.bf16.mxu0 0
    %268 = vmatpush1.bf16.msra.mxu0 0
    %269 = vmatprep.mubr.bf16.mxu0 0
    %270 = vmatmul.mubr.bf16.gmra.mrb[0].mxu0 %v235
    %v271 = vpop.f32.mrb[0].mxu0
    %v272 = vadd.f32 %v84, %v271
    %v273 = vpop.f32.mrb[0].mxu0
    %v274 = vpop.f32.mrb[0].mxu0
    %v275 = vpop.f32.mrb[0].mxu0
    %276 = vdwg.mxu0
    %277 = vst [vmem:[#allocation4 + $0x18] sm:$0xff] %v272
    %s278 = scalar_lea.vmem [#allocation5], 32
    %v279 = vld [vmem:[%s278] sm:$0xff]
    %v280 = vpack.c.bf16 %v279, %v279
    %v282 = vsel %vm92, %v280, 0
    %284 = vmatprep.subr.bf16.mxu0 0
    %285 = vmatpush1.bf16.msra.mxu0 %v90
    %286 = vmatprep.subr.bf16.mxu0 0
    %287 = vmatpush1.bf16.msra.mxu0 0
    %288 = vmatprep.subr.bf16.mxu0 0
    %289 = vmatpush1.bf16.msra.mxu0 0
    %290 = vmatprep.subr.bf16.mxu0 0
    %291 = vmatpush1.bf16.msra.mxu0 0
    %292 = vmatprep.subr.bf16.mxu0 0
    %293 = vmatpush1.bf16.msra.mxu0 0
    %294 = vmatprep.subr.bf16.mxu0 0
    %295 = vmatpush1.bf16.msra.mxu0 0
    %296 = vmatprep.subr.bf16.mxu0 0
    %297 = vmatpush1.bf16.msra.mxu0 0
    %298 = vmatprep.subr.bf16.mxu0 0
    %299 = vmatpush1.bf16.msra.mxu0 0
    %300 = vmatprep.subr.bf16.mxu0 0
    %301 = vmatpush1.bf16.msra.mxu0 0
    %302 = vmatprep.subr.bf16.mxu0 0
    %303 = vmatpush1.bf16.msra.mxu0 0
    %304 = vmatprep.subr.bf16.mxu0 0
    %305 = vmatpush1.bf16.msra.mxu0 0
    %306 = vmatprep.subr.bf16.mxu0 0
    %307 = vmatpush1.bf16.msra.mxu0 0
    %308 = vmatprep.subr.bf16.mxu0 0
    %309 = vmatpush1.bf16.msra.mxu0 0
    %310 = vmatprep.subr.bf16.mxu0 0
    %311 = vmatpush1.bf16.msra.mxu0 0
    %312 = vmatprep.subr.bf16.mxu0 0
    %313 = vmatpush1.bf16.msra.mxu0 0
    %314 = vmatprep.subr.bf16.mxu0 0
    %315 = vmatpush1.bf16.msra.mxu0 0
    %316 = vmatprep.mubr.bf16.mxu0 0
    %317 = vmatmul.mubr.bf16.gmra.mrb[0].mxu0 %v282
    %v318 = vpop.f32.mrb[0].mxu0
    %v319 = vadd.f32 %v84, %v318
    %v320 = vpop.f32.mrb[0].mxu0
    %v321 = vpop.f32.mrb[0].mxu0
    %v322 = vpop.f32.mrb[0].mxu0
    %323 = vdwg.mxu0
    %324 = vst [vmem:[#allocation4 + $0x20] sm:$0xff] %v319
    %s325 = scalar_lea.vmem [#allocation5], 40
    %v326 = vld [vmem:[%s325] sm:$0xff]
    %v327 = vpack.c.bf16 %v326, %v326
    %v329 = vsel %vm92, %v327, 0
    %331 = vmatprep.subr.bf16.mxu0 0
    %332 = vmatpush1.bf16.msra.mxu0 %v90
    %333 = vmatprep.subr.bf16.mxu0 0
    %334 = vmatpush1.bf16.msra.mxu0 0
    %335 = vmatprep.subr.bf16.mxu0 0
    %336 = vmatpush1.bf16.msra.mxu0 0
    %337 = vmatprep.subr.bf16.mxu0 0
    %338 = vmatpush1.bf16.msra.mxu0 0
    %339 = vmatprep.subr.bf16.mxu0 0
    %340 = vmatpush1.bf16.msra.mxu0 0
    %341 = vmatprep.subr.bf16.mxu0 0
    %342 = vmatpush1.bf16.msra.mxu0 0
    %343 = vmatprep.subr.bf16.mxu0 0
    %344 = vmatpush1.bf16.msra.mxu0 0
    %345 = vmatprep.subr.bf16.mxu0 0
    %346 = vmatpush1.bf16.msra.mxu0 0
    %347 = vmatprep.subr.bf16.mxu0 0
    %348 = vmatpush1.bf16.msra.mxu0 0
    %349 = vmatprep.subr.bf16.mxu0 0
    %350 = vmatpush1.bf16.msra.mxu0 0
    %351 = vmatprep.subr.bf16.mxu0 0
    %352 = vmatpush1.bf16.msra.mxu0 0
    %353 = vmatprep.subr.bf16.mxu0 0
    %354 = vmatpush1.bf16.msra.mxu0 0
    %355 = vmatprep.subr.bf16.mxu0 0
    %356 = vmatpush1.bf16.msra.mxu0 0
    %357 = vmatprep.subr.bf16.mxu0 0
    %358 = vmatpush1.bf16.msra.mxu0 0
    %359 = vmatprep.subr.bf16.mxu0 0
    %360 = vmatpush1.bf16.msra.mxu0 0
    %361 = vmatprep.subr.bf16.mxu0 0
    %362 = vmatpush1.bf16.msra.mxu0 0
    %363 = vmatprep.mubr.bf16.mxu0 0
    %364 = vmatmul.mubr.bf16.gmra.mrb[0].mxu0 %v329
    %v365 = vpop.f32.mrb[0].mxu0
    %v366 = vadd.f32 %v84, %v365
    %v367 = vpop.f32.mrb[0].mxu0
    %v368 = vpop.f32.mrb[0].mxu0
    %v369 = vpop.f32.mrb[0].mxu0
    %370 = vdwg.mxu0
    %371 = vst [vmem:[#allocation4 + $0x28] sm:$0xff] %v366
    %s372 = scalar_lea.vmem [#allocation5], 48
    %v373 = vld [vmem:[%s372] sm:$0xff]
    %v374 = vpack.c.bf16 %v373, %v373
    %v376 = vsel %vm92, %v374, 0
    %378 = vmatprep.subr.bf16.mxu0 0
    %379 = vmatpush1.bf16.msra.mxu0 %v90
    %380 = vmatprep.subr.bf16.mxu0 0
    %381 = vmatpush1.bf16.msra.mxu0 0
    %382 = vmatprep.subr.bf16.mxu0 0
    %383 = vmatpush1.bf16.msra.mxu0 0
    %384 = vmatprep.subr.bf16.mxu0 0
    %385 = vmatpush1.bf16.msra.mxu0 0
    %386 = vmatprep.subr.bf16.mxu0 0
    %387 = vmatpush1.bf16.msra.mxu0 0
    %388 = vmatprep.subr.bf16.mxu0 0
    %389 = vmatpush1.bf16.msra.mxu0 0
    %390 = vmatprep.subr.bf16.mxu0 0
    %391 = vmatpush1.bf16.msra.mxu0 0
    %392 = vmatprep.subr.bf16.mxu0 0
    %393 = vmatpush1.bf16.msra.mxu0 0
    %394 = vmatprep.subr.bf16.mxu0 0
    %395 = vmatpush1.bf16.msra.mxu0 0
    %396 = vmatprep.subr.bf16.mxu0 0
    %397 = vmatpush1.bf16.msra.mxu0 0
    %398 = vmatprep.subr.bf16.mxu0 0
    %399 = vmatpush1.bf16.msra.mxu0 0
    %400 = vmatprep.subr.bf16.mxu0 0
    %401 = vmatpush1.bf16.msra.mxu0 0
    %402 = vmatprep.subr.bf16.mxu0 0
    %403 = vmatpush1.bf16.msra.mxu0 0
    %404 = vmatprep.subr.bf16.mxu0 0
    %405 = vmatpush1.bf16.msra.mxu0 0
    %406 = vmatprep.subr.bf16.mxu0 0
    %407 = vmatpush1.bf16.msra.mxu0 0
    %408 = vmatprep.subr.bf16.mxu0 0
    %409 = vmatpush1.bf16.msra.mxu0 0
    %410 = vmatprep.mubr.bf16.mxu0 0
    %411 = vmatmul.mubr.bf16.gmra.mrb[0].mxu0 %v376
    %v412 = vpop.f32.mrb[0].mxu0
    %v413 = vadd.f32 %v84, %v412
    %v414 = vpop.f32.mrb[0].mxu0
    %v415 = vpop.f32.mrb[0].mxu0
    %v416 = vpop.f32.mrb[0].mxu0
    %417 = vdwg.mxu0
    %418 = vst [vmem:[#allocation4 + $0x30] sm:$0xff] %v413
    %s419 = scalar_lea.vmem [#allocation5], 56
    %v420 = vld [vmem:[%s419] sm:$0xff]
    %v421 = vpack.c.bf16 %v420, %v420
    %v423 = vsel %vm92, %v421, 0
    %425 = vmatprep.subr.bf16.mxu0 0
    %426 = vmatpush1.bf16.msra.mxu0 %v90
    %427 = vmatprep.subr.bf16.mxu0 0
    %428 = vmatpush1.bf16.msra.mxu0 0
    %429 = vmatprep.subr.bf16.mxu0 0
    %430 = vmatpush1.bf16.msra.mxu0 0
    %431 = vmatprep.subr.bf16.mxu0 0
    %432 = vmatpush1.bf16.msra.mxu0 0
    %433 = vmatprep.subr.bf16.mxu0 0
    %434 = vmatpush1.bf16.msra.mxu0 0
    %435 = vmatprep.subr.bf16.mxu0 0
    %436 = vmatpush1.bf16.msra.mxu0 0
    %437 = vmatprep.subr.bf16.mxu0 0
    %438 = vmatpush1.bf16.msra.mxu0 0
    %439 = vmatprep.subr.bf16.mxu0 0
    %440 = vmatpush1.bf16.msra.mxu0 0
    %441 = vmatprep.subr.bf16.mxu0 0
    %442 = vmatpush1.bf16.msra.mxu0 0
    %443 = vmatprep.subr.bf16.mxu0 0
    %444 = vmatpush1.bf16.msra.mxu0 0
    %445 = vmatprep.subr.bf16.mxu0 0
    %446 = vmatpush1.bf16.msra.mxu0 0
    %447 = vmatprep.subr.bf16.mxu0 0
    %448 = vmatpush1.bf16.msra.mxu0 0
    %449 = vmatprep.subr.bf16.mxu0 0
    %450 = vmatpush1.bf16.msra.mxu0 0
    %451 = vmatprep.subr.bf16.mxu0 0
    %452 = vmatpush1.bf16.msra.mxu0 0
    %453 = vmatprep.subr.bf16.mxu0 0
    %454 = vmatpush1.bf16.msra.mxu0 0
    %455 = vmatprep.subr.bf16.mxu0 0
    %456 = vmatpush1.bf16.msra.mxu0 0
    %457 = vmatprep.mubr.bf16.mxu0 0
    %458 = vmatmul.mubr.bf16.gmra.mrb[0].mxu0 %v423
    %v459 = vpop.f32.mrb[0].mxu0
    %v460 = vadd.f32 %v84, %v459
    %v461 = vpop.f32.mrb[0].mxu0
    %v462 = vpop.f32.mrb[0].mxu0
    %v463 = vpop.f32.mrb[0].mxu0
    %464 = vdwg.mxu0
    %465 = vst [vmem:[#allocation4 + $0x38] sm:$0xff] %v460
    %v466 = vld [vmem:[#allocation2] sm:$0xff]
    %v467 = vld [vmem:[#allocation3] sm:$0xff]
    %v468 = vld [vmem:[#allocation4] sm:$0xff]
    %v469 = vpack.c.bf16 %v466, %v466
    %v474 = vunpack.c.l.b16 %v73
    %v475 = vunpack.c.l.b16 %v74
    %v476 = vunpack.c.l.b16 %v75
    %v477 = vunpack.c.l.b16 %v76
    %v478 = vpack.c.b16 %v475, %v474
    %v479 = vpack.c.b16 %v477, %v476
    %vm482 = vcmask 261120
    %v484 = vsel %vm482, %v469, 0
    %486 = vmatprep.subr.bf16.mxu0 0
    %487 = vmatpush1.bf16.msra.mxu0 %v478
    %488 = vmatprep.subr.bf16.mxu0 0
    %489 = vmatpush1.bf16.msra.mxu0 %v479
    %490 = vmatprep.subr.bf16.mxu0 0
    %491 = vmatpush1.bf16.msra.mxu0 0
    %492 = vmatprep.subr.bf16.mxu0 0
    %493 = vmatpush1.bf16.msra.mxu0 0
    %494 = vmatprep.subr.bf16.mxu0 0
    %495 = vmatpush1.bf16.msra.mxu0 0
    %496 = vmatprep.subr.bf16.mxu0 0
    %497 = vmatpush1.bf16.msra.mxu0 0
    %498 = vmatprep.subr.bf16.mxu0 0
    %499 = vmatpush1.bf16.msra.mxu0 0
    %500 = vmatprep.subr.bf16.mxu0 0
    %501 = vmatpush1.bf16.msra.mxu0 0
    %502 = vmatprep.subr.bf16.mxu0 0
    %503 = vmatpush1.bf16.msra.mxu0 0
    %504 = vmatprep.subr.bf16.mxu0 0
    %505 = vmatpush1.bf16.msra.mxu0 0
    %506 = vmatprep.subr.bf16.mxu0 0
    %507 = vmatpush1.bf16.msra.mxu0 0
    %508 = vmatprep.subr.bf16.mxu0 0
    %509 = vmatpush1.bf16.msra.mxu0 0
    %510 = vmatprep.subr.bf16.mxu0 0
    %511 = vmatpush1.bf16.msra.mxu0 0
    %512 = vmatprep.subr.bf16.mxu0 0
    %513 = vmatpush1.bf16.msra.mxu0 0
    %514 = vmatprep.subr.bf16.mxu0 0
    %515 = vmatpush1.bf16.msra.mxu0 0
    %516 = vmatprep.subr.bf16.mxu0 0
    %517 = vmatpush1.bf16.msra.mxu0 0
    %518 = vmatprep.mubr.bf16.mxu0 0
    %519 = vmatmul.mubr.bf16.gmra.mrb[0].mxu0 %v484
    %v520 = vpop.f32.mrb[0].mxu0
    %v521 = vadd.f32 0.0, %v520
    %v522 = vpop.f32.mrb[0].mxu0
    %v523 = vpop.f32.mrb[0].mxu0
    %v524 = vpop.f32.mrb[0].mxu0
    %525 = vdwg.mxu0
    %v526 = vadd.f32 %v468, %v521
    %v527 = vxor.u32 %v526, 2147483648
    %v528 = vmul.f32 %v527, 1.442695
    %v529 = vpow.pop %v528
    %v530 = vadd.f32 %v529, 1.0
    %v531 = vrcp.pop %v530
    %v532 = vmul.f32 1.0, %v531
    %v533 = vtanh.pop %v526
    %535 = vrot.lane.b32.xlu0 %v467, 32
    %v536 = vpop.permute.xlu0 %535
    %v538 = vmul.f32 %v532, %v536
    %540 = vrot.lane.b32.xlu0 %v533, 32
    %v541 = vpop.permute.xlu0 %540
    %v543 = vmul.f32 %v532, %v541
    %545 = vrot.lane.b32.xlu0 %v543, 32
    %v546 = vpop.permute.xlu0 %545
    %v548 = vadd.f32 %v538, %v546
    %v549 = vtanh.pop %v548
    %551 = vrot.lane.b32.xlu0 %v549, 32
    %v552 = vpop.permute.xlu0 %551
    %v554 = vmul.f32 %v532, %v552
    %v555 = vpack.c.bf16 %v554, %v554
    %v557 = vunpack.c.l.b16 %v555
    %v558 = vpack.c.b16 %v557, %v557
    %559 = vrot.lane.b32.xlu0 %v558, 64
    %v560 = vpop.permute.xlu0 %559
    %vm562 = vcmask 257024
    %563 = vst.msk [vmem:[#allocation11] sm:$0xf] %vm562, %v560
    %s564 = scalar_lea.vmem [#allocation4], 8
    %v565 = vld [vmem:[%s564] sm:$0xff]
    %566 = vrot.lane.b32.xlu0 %v555, 64
    %v567 = vpop.permute.xlu0 %566
    %v569 = vsel %vm482, %v567, 0
    %571 = vmatprep.subr.bf16.mxu0 0
    %572 = vmatpush1.bf16.msra.mxu0 %v478
    %573 = vmatprep.subr.bf16.mxu0 0
    %574 = vmatpush1.bf16.msra.mxu0 %v479
    %575 = vmatprep.subr.bf16.mxu0 0
    %576 = vmatpush1.bf16.msra.mxu0 0
    %577 = vmatprep.subr.bf16.mxu0 0
    %578 = vmatpush1.bf16.msra.mxu0 0
    %579 = vmatprep.subr.bf16.mxu0 0
    %580 = vmatpush1.bf16.msra.mxu0 0
    %581 = vmatprep.subr.bf16.mxu0 0
    %582 = vmatpush1.bf16.msra.mxu0 0
    %583 = vmatprep.subr.bf16.mxu0 0
    %584 = vmatpush1.bf16.msra.mxu0 0
    %585 = vmatprep.subr.bf16.mxu0 0
    %586 = vmatpush1.bf16.msra.mxu0 0
    %587 = vmatprep.subr.bf16.mxu0 0
    %588 = vmatpush1.bf16.msra.mxu0 0
    %589 = vmatprep.subr.bf16.mxu0 0
    %590 = vmatpush1.bf16.msra.mxu0 0
    %591 = vmatprep.subr.bf16.mxu0 0
    %592 = vmatpush1.bf16.msra.mxu0 0
    %593 = vmatprep.subr.bf16.mxu0 0
    %594 = vmatpush1.bf16.msra.mxu0 0
    %595 = vmatprep.subr.bf16.mxu0 0
    %596 = vmatpush1.bf16.msra.mxu0 0
    %597 = vmatprep.subr.bf16.mxu0 0
    %598 = vmatpush1.bf16.msra.mxu0 0
    %599 = vmatprep.subr.bf16.mxu0 0
    %600 = vmatpush1.bf16.msra.mxu0 0
    %601 = vmatprep.subr.bf16.mxu0 0
    %602 = vmatpush1.bf16.msra.mxu0 0
    %603 = vmatprep.mubr.bf16.mxu0 0
    %604 = vmatmul.mubr.bf16.gmra.mrb[0].mxu0 %v569
    %v605 = vpop.f32.mrb[0].mxu0
    %v606 = vadd.f32 0.0, %v605
    %v607 = vpop.f32.mrb[0].mxu0
    %v608 = vpop.f32.mrb[0].mxu0
    %v609 = vpop.f32.mrb[0].mxu0
    %610 = vdwg.mxu0
    %v611 = vadd.f32 %v565, %v606
    %v612 = vxor.u32 %v611, 2147483648
    %v613 = vmul.f32 %v612, 1.442695
    %v614 = vpow.pop %v613
    %v615 = vadd.f32 %v614, 1.0
    %v616 = vrcp.pop %v615
    %v617 = vmul.f32 1.0, %v616
    %v618 = vtanh.pop %v611
    %v619 = vmul.f32 %v617, %v548
    %621 = vrot.lane.b32.xlu0 %v618, 32
    %v622 = vpop.permute.xlu0 %621
    %v624 = vmul.f32 %v617, %v622
    %626 = vrot.lane.b32.xlu0 %v624, 32
    %v627 = vpop.permute.xlu0 %626
    %v629 = vadd.f32 %v619, %v627
    %v630 = vtanh.pop %v629
    %632 = vrot.lane.b32.xlu0 %v630, 32
    %v633 = vpop.permute.xlu0 %632
    %v635 = vmul.f32 %v617, %v633
    %v636 = vpack.c.bf16 %v635, %v635
    %v638 = vunpack.c.l.b16 %v636
    %v639 = vpack.c.b16 %v638, %v638
    %640 = vrot.lane.b32.xlu0 %v639, 64
    %v641 = vpop.permute.xlu0 %640
    %s643 = scalar_lea.vmem [#allocation11], 4
    %644 = vst.msk [vmem:[%s643] sm:$0xf] %vm562, %v641
    %s645 = scalar_lea.vmem [#allocation4], 16
    %v646 = vld [vmem:[%s645] sm:$0xff]
    %647 = vrot.lane.b32.xlu0 %v636, 64
    %v648 = vpop.permute.xlu0 %647
    %v650 = vsel %vm482, %v648, 0
    %652 = vmatprep.subr.bf16.mxu0 0
    %653 = vmatpush1.bf16.msra.mxu0 %v478
    %654 = vmatprep.subr.bf16.mxu0 0
    %655 = vmatpush1.bf16.msra.mxu0 %v479
    %656 = vmatprep.subr.bf16.mxu0 0
    %657 = vmatpush1.bf16.msra.mxu0 0
    %658 = vmatprep.subr.bf16.mxu0 0
    %659 = vmatpush1.bf16.msra.mxu0 0
    %660 = vmatprep.subr.bf16.mxu0 0
    %661 = vmatpush1.bf16.msra.mxu0 0
    %662 = vmatprep.subr.bf16.mxu0 0
    %663 = vmatpush1.bf16.msra.mxu0 0
    %664 = vmatprep.subr.bf16.mxu0 0
    %665 = vmatpush1.bf16.msra.mxu0 0
    %666 = vmatprep.subr.bf16.mxu0 0
    %667 = vmatpush1.bf16.msra.mxu0 0
    %668 = vmatprep.subr.bf16.mxu0 0
    %669 = vmatpush1.bf16.msra.mxu0 0
    %670 = vmatprep.subr.bf16.mxu0 0
    %671 = vmatpush1.bf16.msra.mxu0 0
    %672 = vmatprep.subr.bf16.mxu0 0
    %673 = vmatpush1.bf16.msra.mxu0 0
    %674 = vmatprep.subr.bf16.mxu0 0
    %675 = vmatpush1.bf16.msra.mxu0 0
    %676 = vmatprep.subr.bf16.mxu0 0
    %677 = vmatpush1.bf16.msra.mxu0 0
    %678 = vmatprep.subr.bf16.mxu0 0
    %679 = vmatpush1.bf16.msra.mxu0 0
    %680 = vmatprep.subr.bf16.mxu0 0
    %681 = vmatpush1.bf16.msra.mxu0 0
    %682 = vmatprep.subr.bf16.mxu0 0
    %683 = vmatpush1.bf16.msra.mxu0 0
    %684 = vmatprep.mubr.bf16.mxu0 0
    %685 = vmatmul.mubr.bf16.gmra.mrb[0].mxu0 %v650
    %v686 = vpop.f32.mrb[0].mxu0
    %v687 = vadd.f32 0.0, %v686
    %v688 = vpop.f32.mrb[0].mxu0
    %v689 = vpop.f32.mrb[0].mxu0
    %v690 = vpop.f32.mrb[0].mxu0
    %691 = vdwg.mxu0
    %v692 = vadd.f32 %v646, %v687
    %v693 = vxor.u32 %v692, 2147483648
    %v694 = vmul.f32 %v693, 1.442695
    %v695 = vpow.pop %v694
    %v696 = vadd.f32 %v695, 1.0
    %v697 = vrcp.pop %v696
    %v698 = vmul.f32 1.0, %v697
    %v699 = vtanh.pop %v692
    %v700 = vmul.f32 %v698, %v629
    %702 = vrot.lane.b32.xlu0 %v699, 32
    %v703 = vpop.permute.xlu0 %702
    %v705 = vmul.f32 %v698, %v703
    %707 = vrot.lane.b32.xlu0 %v705, 32
    %v708 = vpop.permute.xlu0 %707
    %v710 = vadd.f32 %v700, %v708
    %v711 = vtanh.pop %v710
    %713 = vrot.lane.b32.xlu0 %v711, 32
    %v714 = vpop.permute.xlu0 %713
    %v716 = vmul.f32 %v698, %v714
    %v717 = vpack.c.bf16 %v716, %v716
    %v719 = vunpack.c.l.b16 %v717
    %v720 = vpack.c.b16 %v719, %v719
    %721 = vrot.lane.b32.xlu0 %v720, 64
    %v722 = vpop.permute.xlu0 %721
    %s724 = scalar_lea.vmem [#allocation11], 8
    %725 = vst.msk [vmem:[%s724] sm:$0xf] %vm562, %v722
    %s726 = scalar_lea.vmem [#allocation4], 24
    %v727 = vld [vmem:[%s726] sm:$0xff]
    %728 = vrot.lane.b32.xlu0 %v717, 64
    %v729 = vpop.permute.xlu0 %728
    %v731 = vsel %vm482, %v729, 0
    %733 = vmatprep.subr.bf16.mxu0 0
    %734 = vmatpush1.bf16.msra.mxu0 %v478
    %735 = vmatprep.subr.bf16.mxu0 0
    %736 = vmatpush1.bf16.msra.mxu0 %v479
    %737 = vmatprep.subr.bf16.mxu0 0
    %738 = vmatpush1.bf16.msra.mxu0 0
    %739 = vmatprep.subr.bf16.mxu0 0
    %740 = vmatpush1.bf16.msra.mxu0 0
    %741 = vmatprep.subr.bf16.mxu0 0
    %742 = vmatpush1.bf16.msra.mxu0 0
    %743 = vmatprep.subr.bf16.mxu0 0
    %744 = vmatpush1.bf16.msra.mxu0 0
    %745 = vmatprep.subr.bf16.mxu0 0
    %746 = vmatpush1.bf16.msra.mxu0 0
    %747 = vmatprep.subr.bf16.mxu0 0
    %748 = vmatpush1.bf16.msra.mxu0 0
    %749 = vmatprep.subr.bf16.mxu0 0
    %750 = vmatpush1.bf16.msra.mxu0 0
    %751 = vmatprep.subr.bf16.mxu0 0
    %752 = vmatpush1.bf16.msra.mxu0 0
    %753 = vmatprep.subr.bf16.mxu0 0
    %754 = vmatpush1.bf16.msra.mxu0 0
    %755 = vmatprep.subr.bf16.mxu0 0
    %756 = vmatpush1.bf16.msra.mxu0 0
    %757 = vmatprep.subr.bf16.mxu0 0
    %758 = vmatpush1.bf16.msra.mxu0 0
    %759 = vmatprep.subr.bf16.mxu0 0
    %760 = vmatpush1.bf16.msra.mxu0 0
    %761 = vmatprep.subr.bf16.mxu0 0
    %762 = vmatpush1.bf16.msra.mxu0 0
    %763 = vmatprep.subr.bf16.mxu0 0
    %764 = vmatpush1.bf16.msra.mxu0 0
    %765 = vmatprep.mubr.bf16.mxu0 0
    %766 = vmatmul.mubr.bf16.gmra.mrb[0].mxu0 %v731
    %v767 = vpop.f32.mrb[0].mxu0
    %v768 = vadd.f32 0.0, %v767
    %v769 = vpop.f32.mrb[0].mxu0
    %v770 = vpop.f32.mrb[0].mxu0
    %v771 = vpop.f32.mrb[0].mxu0
    %772 = vdwg.mxu0
    %v773 = vadd.f32 %v727, %v768
    %v774 = vxor.u32 %v773, 2147483648
    %v775 = vmul.f32 %v774, 1.442695
    %v776 = vpow.pop %v775
    %v777 = vadd.f32 %v776, 1.0
    %v778 = vrcp.pop %v777
    %v779 = vmul.f32 1.0, %v778
    %v780 = vtanh.pop %v773
    %v781 = vmul.f32 %v779, %v710
    %783 = vrot.lane.b32.xlu0 %v780, 32
    %v784 = vpop.permute.xlu0 %783
    %v786 = vmul.f32 %v779, %v784
    %788 = vrot.lane.b32.xlu0 %v786, 32
    %v789 = vpop.permute.xlu0 %788
    %v791 = vadd.f32 %v781, %v789
    %v792 = vtanh.pop %v791
    %794 = vrot.lane.b32.xlu0 %v792, 32
    %v795 = vpop.permute.xlu0 %794
    %v797 = vmul.f32 %v779, %v795
    %v798 = vpack.c.bf16 %v797, %v797
    %v800 = vunpack.c.l.b16 %v798
    %v801 = vpack.c.b16 %v800, %v800
    %802 = vrot.lane.b32.xlu0 %v801, 64
    %v803 = vpop.permute.xlu0 %802
    %s805 = scalar_lea.vmem [#allocation11], 12
    %806 = vst.msk [vmem:[%s805] sm:$0xf] %vm562, %v803
    %s807 = scalar_lea.vmem [#allocation4], 32
    %v808 = vld [vmem:[%s807] sm:$0xff]
    %809 = vrot.lane.b32.xlu0 %v798, 64
    %v810 = vpop.permute.xlu0 %809
    %v812 = vsel %vm482, %v810, 0
    %814 = vmatprep.subr.bf16.mxu0 0
    %815 = vmatpush1.bf16.msra.mxu0 %v478
    %816 = vmatprep.subr.bf16.mxu0 0
    %817 = vmatpush1.bf16.msra.mxu0 %v479
    %818 = vmatprep.subr.bf16.mxu0 0
    %819 = vmatpush1.bf16.msra.mxu0 0
    %820 = vmatprep.subr.bf16.mxu0 0
    %821 = vmatpush1.bf16.msra.mxu0 0
    %822 = vmatprep.subr.bf16.mxu0 0
    %823 = vmatpush1.bf16.msra.mxu0 0
    %824 = vmatprep.subr.bf16.mxu0 0
    %825 = vmatpush1.bf16.msra.mxu0 0
    %826 = vmatprep.subr.bf16.mxu0 0
    %827 = vmatpush1.bf16.msra.mxu0 0
    %828 = vmatprep.subr.bf16.mxu0 0
    %829 = vmatpush1.bf16.msra.mxu0 0
    %830 = vmatprep.subr.bf16.mxu0 0
    %831 = vmatpush1.bf16.msra.mxu0 0
    %832 = vmatprep.subr.bf16.mxu0 0
    %833 = vmatpush1.bf16.msra.mxu0 0
    %834 = vmatprep.subr.bf16.mxu0 0
    %835 = vmatpush1.bf16.msra.mxu0 0
    %836 = vmatprep.subr.bf16.mxu0 0
    %837 = vmatpush1.bf16.msra.mxu0 0
    %838 = vmatprep.subr.bf16.mxu0 0
    %839 = vmatpush1.bf16.msra.mxu0 0
    %840 = vmatprep.subr.bf16.mxu0 0
    %841 = vmatpush1.bf16.msra.mxu0 0
    %842 = vmatprep.subr.bf16.mxu0 0
    %843 = vmatpush1.bf16.msra.mxu0 0
    %844 = vmatprep.subr.bf16.mxu0 0
    %845 = vmatpush1.bf16.msra.mxu0 0
    %846 = vmatprep.mubr.bf16.mxu0 0
    %847 = vmatmul.mubr.bf16.gmra.mrb[0].mxu0 %v812
    %v848 = vpop.f32.mrb[0].mxu0
    %v849 = vadd.f32 0.0, %v848
    %v850 = vpop.f32.mrb[0].mxu0
    %v851 = vpop.f32.mrb[0].mxu0
    %v852 = vpop.f32.mrb[0].mxu0
    %853 = vdwg.mxu0
    %v854 = vadd.f32 %v808, %v849
    %v855 = vxor.u32 %v854, 2147483648
    %v856 = vmul.f32 %v855, 1.442695
    %v857 = vpow.pop %v856
    %v858 = vadd.f32 %v857, 1.0
    %v859 = vrcp.pop %v858
    %v860 = vmul.f32 1.0, %v859
    %v861 = vtanh.pop %v854
    %v862 = vmul.f32 %v860, %v791
    %864 = vrot.lane.b32.xlu0 %v861, 32
    %v865 = vpop.permute.xlu0 %864
    %v867 = vmul.f32 %v860, %v865
    %869 = vrot.lane.b32.xlu0 %v867, 32
    %v870 = vpop.permute.xlu0 %869
    %v872 = vadd.f32 %v862, %v870
    %v873 = vtanh.pop %v872
    %875 = vrot.lane.b32.xlu0 %v873, 32
    %v876 = vpop.permute.xlu0 %875
    %v878 = vmul.f32 %v860, %v876
    %v879 = vpack.c.bf16 %v878, %v878
    %v881 = vunpack.c.l.b16 %v879
    %v882 = vpack.c.b16 %v881, %v881
    %883 = vrot.lane.b32.xlu0 %v882, 64
    %v884 = vpop.permute.xlu0 %883
    %s886 = scalar_lea.vmem [#allocation11], 16
    %887 = vst.msk [vmem:[%s886] sm:$0xf] %vm562, %v884
    %s888 = scalar_lea.vmem [#allocation4], 40
    %v889 = vld [vmem:[%s888] sm:$0xff]
    %890 = vrot.lane.b32.xlu0 %v879, 64
    %v891 = vpop.permute.xlu0 %890
    %v893 = vsel %vm482, %v891, 0
    %895 = vmatprep.subr.bf16.mxu0 0
    %896 = vmatpush1.bf16.msra.mxu0 %v478
    %897 = vmatprep.subr.bf16.mxu0 0
    %898 = vmatpush1.bf16.msra.mxu0 %v479
    %899 = vmatprep.subr.bf16.mxu0 0
    %900 = vmatpush1.bf16.msra.mxu0 0
    %901 = vmatprep.subr.bf16.mxu0 0
    %902 = vmatpush1.bf16.msra.mxu0 0
    %903 = vmatprep.subr.bf16.mxu0 0
    %904 = vmatpush1.bf16.msra.mxu0 0
    %905 = vmatprep.subr.bf16.mxu0 0
    %906 = vmatpush1.bf16.msra.mxu0 0
    %907 = vmatprep.subr.bf16.mxu0 0
    %908 = vmatpush1.bf16.msra.mxu0 0
    %909 = vmatprep.subr.bf16.mxu0 0
    %910 = vmatpush1.bf16.msra.mxu0 0
    %911 = vmatprep.subr.bf16.mxu0 0
    %912 = vmatpush1.bf16.msra.mxu0 0
    %913 = vmatprep.subr.bf16.mxu0 0
    %914 = vmatpush1.bf16.msra.mxu0 0
    %915 = vmatprep.subr.bf16.mxu0 0
    %916 = vmatpush1.bf16.msra.mxu0 0
    %917 = vmatprep.subr.bf16.mxu0 0
    %918 = vmatpush1.bf16.msra.mxu0 0
    %919 = vmatprep.subr.bf16.mxu0 0
    %920 = vmatpush1.bf16.msra.mxu0 0
    %921 = vmatprep.subr.bf16.mxu0 0
    %922 = vmatpush1.bf16.msra.mxu0 0
    %923 = vmatprep.subr.bf16.mxu0 0
    %924 = vmatpush1.bf16.msra.mxu0 0
    %925 = vmatprep.subr.bf16.mxu0 0
    %926 = vmatpush1.bf16.msra.mxu0 0
    %927 = vmatprep.mubr.bf16.mxu0 0
    %928 = vmatmul.mubr.bf16.gmra.mrb[0].mxu0 %v893
    %v929 = vpop.f32.mrb[0].mxu0
    %v930 = vadd.f32 0.0, %v929
    %v931 = vpop.f32.mrb[0].mxu0
    %v932 = vpop.f32.mrb[0].mxu0
    %v933 = vpop.f32.mrb[0].mxu0
    %934 = vdwg.mxu0
    %v935 = vadd.f32 %v889, %v930
    %v936 = vxor.u32 %v935, 2147483648
    %v937 = vmul.f32 %v936, 1.442695
    %v938 = vpow.pop %v937
    %v939 = vadd.f32 %v938, 1.0
    %v940 = vrcp.pop %v939
    %v941 = vmul.f32 1.0, %v940
    %v942 = vtanh.pop %v935
    %v943 = vmul.f32 %v941, %v872
    %945 = vrot.lane.b32.xlu0 %v942, 32
    %v946 = vpop.permute.xlu0 %945
    %v948 = vmul.f32 %v941, %v946
    %950 = vrot.lane.b32.xlu0 %v948, 32
    %v951 = vpop.permute.xlu0 %950
    %v953 = vadd.f32 %v943, %v951
    %v954 = vtanh.pop %v953
    %956 = vrot.lane.b32.xlu0 %v954, 32
    %v957 = vpop.permute.xlu0 %956
    %v959 = vmul.f32 %v941, %v957
    %v960 = vpack.c.bf16 %v959, %v959
    %v962 = vunpack.c.l.b16 %v960
    %v963 = vpack.c.b16 %v962, %v962
    %964 = vrot.lane.b32.xlu0 %v963, 64
    %v965 = vpop.permute.xlu0 %964
    %s967 = scalar_lea.vmem [#allocation11], 20
    %968 = vst.msk [vmem:[%s967] sm:$0xf] %vm562, %v965
    %s969 = scalar_lea.vmem [#allocation4], 48
    %v970 = vld [vmem:[%s969] sm:$0xff]
    %971 = vrot.lane.b32.xlu0 %v960, 64
    %v972 = vpop.permute.xlu0 %971
    %v974 = vsel %vm482, %v972, 0
    %976 = vmatprep.subr.bf16.mxu0 0
    %977 = vmatpush1.bf16.msra.mxu0 %v478
    %978 = vmatprep.subr.bf16.mxu0 0
    %979 = vmatpush1.bf16.msra.mxu0 %v479
    %980 = vmatprep.subr.bf16.mxu0 0
    %981 = vmatpush1.bf16.msra.mxu0 0
    %982 = vmatprep.subr.bf16.mxu0 0
    %983 = vmatpush1.bf16.msra.mxu0 0
    %984 = vmatprep.subr.bf16.mxu0 0
    %985 = vmatpush1.bf16.msra.mxu0 0
    %986 = vmatprep.subr.bf16.mxu0 0
    %987 = vmatpush1.bf16.msra.mxu0 0
    %988 = vmatprep.subr.bf16.mxu0 0
    %989 = vmatpush1.bf16.msra.mxu0 0
    %990 = vmatprep.subr.bf16.mxu0 0
    %991 = vmatpush1.bf16.msra.mxu0 0
    %992 = vmatprep.subr.bf16.mxu0 0
    %993 = vmatpush1.bf16.msra.mxu0 0
    %994 = vmatprep.subr.bf16.mxu0 0
    %995 = vmatpush1.bf16.msra.mxu0 0
    %996 = vmatprep.subr.bf16.mxu0 0
    %997 = vmatpush1.bf16.msra.mxu0 0
    %998 = vmatprep.subr.bf16.mxu0 0
    %999 = vmatpush1.bf16.msra.mxu0 0
    %1000 = vmatprep.subr.bf16.mxu0 0
    %1001 = vmatpush1.bf16.msra.mxu0 0
    %1002 = vmatprep.subr.bf16.mxu0 0
    %1003 = vmatpush1.bf16.msra.mxu0 0
    %1004 = vmatprep.subr.bf16.mxu0 0
    %1005 = vmatpush1.bf16.msra.mxu0 0
    %1006 = vmatprep.subr.bf16.mxu0 0
    %1007 = vmatpush1.bf16.msra.mxu0 0
    %1008 = vmatprep.mubr.bf16.mxu0 0
    %1009 = vmatmul.mubr.bf16.gmra.mrb[0].mxu0 %v974
    %v1010 = vpop.f32.mrb[0].mxu0
    %v1011 = vadd.f32 0.0, %v1010
    %v1012 = vpop.f32.mrb[0].mxu0
    %v1013 = vpop.f32.mrb[0].mxu0
    %v1014 = vpop.f32.mrb[0].mxu0
    %1015 = vdwg.mxu0
    %v1016 = vadd.f32 %v970, %v1011
    %v1017 = vxor.u32 %v1016, 2147483648
    %v1018 = vmul.f32 %v1017, 1.442695
    %v1019 = vpow.pop %v1018
    %v1020 = vadd.f32 %v1019, 1.0
    %v1021 = vrcp.pop %v1020
    %v1022 = vmul.f32 1.0, %v1021
    %v1023 = vtanh.pop %v1016
    %v1024 = vmul.f32 %v1022, %v953
    %1026 = vrot.lane.b32.xlu0 %v1023, 32
    %v1027 = vpop.permute.xlu0 %1026
    %v1029 = vmul.f32 %v1022, %v1027
    %1031 = vrot.lane.b32.xlu0 %v1029, 32
    %v1032 = vpop.permute.xlu0 %1031
    %v1034 = vadd.f32 %v1024, %v1032
    %v1035 = vtanh.pop %v1034
    %1037 = vrot.lane.b32.xlu0 %v1035, 32
    %v1038 = vpop.permute.xlu0 %1037
    %v1040 = vmul.f32 %v1022, %v1038
    %v1041 = vpack.c.bf16 %v1040, %v1040
    %v1043 = vunpack.c.l.b16 %v1041
    %v1044 = vpack.c.b16 %v1043, %v1043
    %1045 = vrot.lane.b32.xlu0 %v1044, 64
    %v1046 = vpop.permute.xlu0 %1045
    %s1048 = scalar_lea.vmem [#allocation11], 24
    %1049 = vst.msk [vmem:[%s1048] sm:$0xf] %vm562, %v1046
    %s1050 = scalar_lea.vmem [#allocation4], 56
    %v1051 = vld [vmem:[%s1050] sm:$0xff]
    %1052 = vrot.lane.b32.xlu0 %v1041, 64
    %v1053 = vpop.permute.xlu0 %1052
    %v1055 = vsel %vm482, %v1053, 0
    %1057 = vmatprep.subr.bf16.mxu0 0
    %1058 = vmatpush1.bf16.msra.mxu0 %v478
    %1059 = vmatprep.subr.bf16.mxu0 0
    %1060 = vmatpush1.bf16.msra.mxu0 %v479
    %1061 = vmatprep.subr.bf16.mxu0 0
    %1062 = vmatpush1.bf16.msra.mxu0 0
    %1063 = vmatprep.subr.bf16.mxu0 0
    %1064 = vmatpush1.bf16.msra.mxu0 0
    %1065 = vmatprep.subr.bf16.mxu0 0
    %1066 = vmatpush1.bf16.msra.mxu0 0
    %1067 = vmatprep.subr.bf16.mxu0 0
    %1068 = vmatpush1.bf16.msra.mxu0 0
    %1069 = vmatprep.subr.bf16.mxu0 0
    %1070 = vmatpush1.bf16.msra.mxu0 0
    %1071 = vmatprep.subr.bf16.mxu0 0
    %1072 = vmatpush1.bf16.msra.mxu0 0
    %1073 = vmatprep.subr.bf16.mxu0 0
    %1074 = vmatpush1.bf16.msra.mxu0 0
    %1075 = vmatprep.subr.bf16.mxu0 0
    %1076 = vmatpush1.bf16.msra.mxu0 0
    %1077 = vmatprep.subr.bf16.mxu0 0
    %1078 = vmatpush1.bf16.msra.mxu0 0
    %1079 = vmatprep.subr.bf16.mxu0 0
    %1080 = vmatpush1.bf16.msra.mxu0 0
    %1081 = vmatprep.subr.bf16.mxu0 0
    %1082 = vmatpush1.bf16.msra.mxu0 0
    %1083 = vmatprep.subr.bf16.mxu0 0
    %1084 = vmatpush1.bf16.msra.mxu0 0
    %1085 = vmatprep.subr.bf16.mxu0 0
    %1086 = vmatpush1.bf16.msra.mxu0 0
    %1087 = vmatprep.subr.bf16.mxu0 0
    %1088 = vmatpush1.bf16.msra.mxu0 0
    %1089 = vmatprep.mubr.bf16.mxu0 0
    %1090 = vmatmul.mubr.bf16.gmra.mrb[0].mxu0 %v1055
    %v1091 = vpop.f32.mrb[0].mxu0
    %v1092 = vadd.f32 0.0, %v1091
    %v1093 = vpop.f32.mrb[0].mxu0
    %v1094 = vpop.f32.mrb[0].mxu0
    %v1095 = vpop.f32.mrb[0].mxu0
    %1096 = vdwg.mxu0
    %v1097 = vadd.f32 %v1051, %v1092
    %v1098 = vxor.u32 %v1097, 2147483648
    %v1099 = vmul.f32 %v1098, 1.442695
    %v1100 = vpow.pop %v1099
    %v1101 = vadd.f32 %v1100, 1.0
    %v1102 = vrcp.pop %v1101
    %v1103 = vmul.f32 1.0, %v1102
    %v1104 = vtanh.pop %v1097
    %v1105 = vmul.f32 %v1103, %v1034
    %1107 = vrot.lane.b32.xlu0 %v1104, 32
    %v1108 = vpop.permute.xlu0 %1107
    %v1110 = vmul.f32 %v1103, %v1108
    %1112 = vrot.lane.b32.xlu0 %v1110, 32
    %v1113 = vpop.permute.xlu0 %1112
    %v1115 = vadd.f32 %v1105, %v1113
    %v1116 = vtanh.pop %v1115
    %1118 = vrot.lane.b32.xlu0 %v1116, 32
    %v1119 = vpop.permute.xlu0 %1118
    %v1121 = vmul.f32 %v1103, %v1119
    %v1122 = vpack.c.bf16 %v1121, %v1121
    %v1124 = vunpack.c.l.b16 %v1122
    %v1125 = vpack.c.b16 %v1124, %v1124
    %1126 = vrot.lane.b32.xlu0 %v1125, 64
    %v1127 = vpop.permute.xlu0 %1126
    %s1129 = scalar_lea.vmem [#allocation11], 28
    %1130 = vst.msk [vmem:[%s1129] sm:$0xf] %vm562, %v1127
    %1132 = vrot.lane.b32.xlu0 %v1121, 64
    %v1133 = vpop.permute.xlu0 %1132
    %1135 = vst.msk [vmem:[#allocation2] sm:$0xff] %vm482, %v1133
    %1137 = vrot.lane.b32.xlu0 %v1115, 96
    %v1138 = vpop.permute.xlu0 %1137
    %1140 = vst.msk [vmem:[#allocation3] sm:$0xff] %vm482, %v1138
    // Predicated region
    $region34: #{tpu_custom_call.1} parent=1 // pred_check
      %p1141 = pneg %p64
    $region35: #{tpu_custom_call.1} parent=1 // pred_check_branch
      %1143 = sbr.rel (%p1141) target = $region37
    $region36: #{tpu_custom_call.1} parent=1 // pred_region
      %1144 = vst.msk [vmem:[#allocation12] sm:$0xff] %vm482, %v1133
      %1145 = vst.msk [vmem:[#allocation14] sm:$0xff] %vm482, %v1138
    $region37: #{tpu_custom_call.1} parent=1 // pred_fallthru
      _
    // Predicated region
    $region38: #{tpu_custom_call.1} parent=1 // pred_check
      _
    $region39: #{tpu_custom_call.1} parent=1 // pred_check_branch
      %1147 = sbr.rel (0) target = $region41
    $region40: #{tpu_custom_call.1} parent=1 // pred_region
      %s1149 = ssub.s32 512, 512
      %1150 = vsyncadd [#allocation7], %s1149
      %s1151 = sshll.u32 [#allocation11], 4
      %s1152 = int_to_ptr.vmem [resolvable:$true] %s1151
      %1157 = dma.vmem_to_hbm [thread:$0]  %s1152, 512, %s4, [#allocation7], 64, 64, 4
    $region41: #{tpu_custom_call.1} parent=1 // pred_fallthru
      _
    // Predicated region
    $region42: #{tpu_custom_call.1} parent=1 // pred_check
      _
    $region43: #{tpu_custom_call.1} parent=1 // pred_check_branch
      %1159 = sbr.rel (0) target = $region45
    $region44: #{tpu_custom_call.1} parent=1 // pred_region
      %s1161 = ssub.s32 128, 128
      %1162 = vsyncadd [#allocation13], %s1161
      %s1164 = sshll.u32 [#allocation12], 4
      %s1165 = int_to_ptr.vmem [resolvable:$true] %s1164
      %1167 = dma.vmem_to_hbm [thread:$0]  %s1165, 128, %s5, [#allocation13]
    $region45: #{tpu_custom_call.1} parent=1 // pred_fallthru
      _
    // Predicated region
    $region46: #{tpu_custom_call.1} parent=1 // pred_check
      _
    $region47: #{tpu_custom_call.1} parent=1 // pred_check_branch
      %1169 = sbr.rel (0) target = $region49
    $region48: #{tpu_custom_call.1} parent=1 // pred_region
      %s1171 = ssub.s32 128, 128
      %1172 = vsyncadd [#allocation13], %s1171
      %s1174 = sshll.u32 [#allocation14], 4
      %s1175 = int_to_ptr.vmem [resolvable:$true] %s1174
      %1177 = dma.vmem_to_hbm [thread:$0]  %s1175, 128, %s6, [#allocation13]
    $region49: #{tpu_custom_call.1} parent=1 // pred_fallthru
      _
    // Predicated region
    $region50: #{tpu_custom_call.1} parent=1 // pred_check
      _
    $region51: #{tpu_custom_call.1} parent=1 // pred_check_branch
      %1179 = sbr.rel (0) target = $region53
    $region52: #{tpu_custom_call.1} parent=1 // pred_region
      %1180 = dma.done [#allocation7], 512
    $region53: #{tpu_custom_call.1} parent=1 // pred_fallthru
      _
    // Predicated region
    $region54: #{tpu_custom_call.1} parent=1 // pred_check
      _
    $region55: #{tpu_custom_call.1} parent=1 // pred_check_branch
      %1182 = sbr.rel (0) target = $region57
    $region56: #{tpu_custom_call.1} parent=1 // pred_region
      %1183 = dma.done [#allocation13], 128
    $region57: #{tpu_custom_call.1} parent=1 // pred_fallthru
      _
    // Predicated region
    $region58: #{tpu_custom_call.1} parent=1 // pred_check
      _
    $region59: #{tpu_custom_call.1} parent=1 // pred_check_branch
      %1185 = sbr.rel (0) target = $region61
    $region60: #{tpu_custom_call.1} parent=1 // pred_region
      %1186 = dma.done [#allocation13], 128
    $region61: #{tpu_custom_call.1} parent=1 // pred_fallthru
      _
    %1187 = vsyncpa [#allocation6], 1
    %1188 = vsyncpa [#allocation9], 1
    %1189 = vsyncpa [#allocation7], 1
    %1190 = vsyncpa [#allocation13], 1

</llo_original>
